<compile_context>
chip_gen: v6e
topology: v6e:2x2x1
jax: 0.10.0
libtpu: 0.0.40
codegen_flags: <defaults>
</compile_context>

<pallas_src>
import jax
import jax.numpy as jnp
from jax.experimental import pallas as pl
from jax.experimental.pallas import tpu as pltpu

LEAKY_SLOPE = 0.01        # torch.nn.LeakyReLU default negative_slope
LANE = 128                # TPU lane width; channels are zero-padded to this
MM_DTYPE = jnp.bfloat16   # matmul operand dtype (accumulation stays f32)


def _leaky_relu(x):
    return jnp.where(x >= 0, x, LEAKY_SLOPE * x)


# ----------------------------------------------------------------------------
# Fused whole-network Pallas kernel
# ----------------------------------------------------------------------------
def _build_fused_call(B, L, K, blocks_meta):
    """blocks_meta: list of {'dilation': int, 'has_res': bool} per block."""
    max_pad = (K - 1) * max(m["dilation"] for m in blocks_meta)

    def kernel(*refs):
        x_ref = refs[0]
        o_ref = refs[-2]
        buf = refs[-1]                 # VMEM [max_pad + L, LANE] f32 staging
        w_refs = refs[1:-2]

        # Causal-pad rows: zeroed once per grid step; layers never write them.
        # (Per-step, not program_id==0-gated: each TensorCore that picks up a
        #  slice of the batch grid must see an initialized pad region.)
        if max_pad > 0:
            buf[pl.ds(0, max_pad), :] = jnp.zeros((max_pad, LANE), jnp.float32)

        def conv(h, w_ref, b_ref, dilation):
            # Stage h below the zero pad rows, gather the K dilated taps as
            # lane-aligned column groups (static slices of the staging buffer),
            # and do a single im2col matmul on the MXU.
            buf[pl.ds(max_pad, L), :] = h
            base = max_pad - (K - 1) * dilation
            cols = jnp.concatenate(
                [buf[pl.ds(base + k * dilation, L), :] for k in range(K)],
                axis=-1)                                       # [L, K*LANE] f32
            out = jnp.dot(cols.astype(MM_DTYPE), w_ref[...],
                          preferred_element_type=jnp.float32)  # [L, LANE] f32
            return out + b_ref[...]

        h = x_ref[0]                   # [L, LANE] f32, padded channels are 0
        wi = 0
        for m in blocks_meta:          # static python loop (trace-time unroll)
            d = m["dilation"]
            w1, b1 = w_refs[wi], w_refs[wi + 1]
            w2, b2 = w_refs[wi + 2], w_refs[wi + 3]
            wi += 4
            if m["has_res"]:
                wres, bres = w_refs[wi], w_refs[wi + 1]
                wi += 2

            x_res = h

            h1 = _leaky_relu(conv(h, w1, b1, d))    # causal conv #1 + LeakyReLU
            h2 = _leaky_relu(conv(h1, w2, b2, d))   # causal conv #2 + LeakyReLU

            # residual branch: identity or 1x1 conv (single MXU matmul)
            if m["has_res"]:
                res = jnp.dot(x_res.astype(MM_DTYPE), wres[...],
                              preferred_element_type=jnp.float32) + bres[...]
            else:
                res = x_res

            h = h2 + res               # blocks built with final=False: no act

        o_ref[0] = h

    in_specs = [pl.BlockSpec((1, L, LANE), lambda b: (b, 0, 0))]   # input
    weight_bytes = 0
    n_res = 0
    for m in blocks_meta:
        in_specs += [
            pl.BlockSpec((K * LANE, LANE), lambda b: (0, 0)),      # conv1 W
            pl.BlockSpec((1, LANE), lambda b: (0, 0)),             # conv1 b
            pl.BlockSpec((K * LANE, LANE), lambda b: (0, 0)),      # conv2 W
            pl.BlockSpec((1, LANE), lambda b: (0, 0)),             # conv2 b
        ]
        weight_bytes += 2 * (K * LANE * LANE * 2 + LANE * 4)
        if m["has_res"]:
            in_specs += [
                pl.BlockSpec((LANE, LANE), lambda b: (0, 0)),      # 1x1 res W
                pl.BlockSpec((1, LANE), lambda b: (0, 0)),         # 1x1 res b
            ]
            weight_bytes += LANE * LANE * 2 + LANE * 4
            n_res += 1

    n_blocks = len(blocks_meta)
    flops = B * (2 * n_blocks * 2 * L * (K * LANE) * LANE    # causal convs
                 + 2 * n_res * L * LANE * LANE)              # 1x1 residuals
    bytes_accessed = 2 * B * L * LANE * 4 + weight_bytes     # in + out + W

    return pl.pallas_call(
        kernel,
        out_shape=jax.ShapeDtypeStruct((B, L, LANE), jnp.float32),
        grid_spec=pltpu.PrefetchScalarGridSpec(
            num_scalar_prefetch=0,
            grid=(B,),
            in_specs=in_specs,
            out_specs=pl.BlockSpec((1, L, LANE), lambda b: (b, 0, 0)),
            scratch_shapes=[pltpu.VMEM((max_pad + L, LANE), jnp.float32)],
        ),
        compiler_params=pltpu.CompilerParams(
            dimension_semantics=("parallel",)),
        cost_estimate=pl.CostEstimate(flops=flops, transcendentals=0,
                                      bytes_accessed=bytes_accessed),
    )


# ----------------------------------------------------------------------------
# Parameter construction (deterministic, synthetic) + weight-norm folding
# ----------------------------------------------------------------------------
def _fold_weight_norm(v, g):
    # torch.nn.utils.weight_norm(conv) with default dim=0:  W = g * v / ||v||
    # v: [c_out, c_in, K], g: [c_out]; norm over (c_in, K) per output channel.
    norm = jnp.sqrt(jnp.sum(v * v, axis=(1, 2), keepdims=True))
    return g[:, None, None] * v / norm


def _to_kio(w_torch):
    # torch Conv1d weight [c_out, c_in, K] -> kernel layout [K, c_in, c_out]
    return jnp.transpose(w_torch, (2, 1, 0))


def _pad_w_im2col(w_kio):
    # [K, c_in, c_out] f32 -> lane-padded im2col layout [K*LANE, LANE] bf16
    Kk, ci, co = w_kio.shape
    wp = jnp.zeros((Kk, LANE, LANE), jnp.float32).at[:, :ci, :co].set(w_kio)
    return wp.reshape(Kk * LANE, LANE).astype(MM_DTYPE)


def _pad_b(b):
    # [c_out] f32 -> [1, LANE] f32 (padded channels get 0 bias -> stay 0)
    return jnp.pad(b, (0, LANE - b.shape[0]))[None, :].astype(jnp.float32)


def init_causal_cnn_params(key, in_channels, channels, depth, out_channels,
                           kernel_size):
    cfgs = []
    for i in range(depth):
        cfgs.append((in_channels if i == 0 else channels, channels, 2 ** i))
    cfgs.append((channels, out_channels, 2 ** depth))

    params = []
    for (c_in, c_out, dil) in cfgs:
        assert c_in <= LANE and c_out <= LANE, "channel counts must be <= 128"
        key, *ks = jax.random.split(key, 9)
        v1 = 0.3 * jax.random.normal(ks[0], (c_out, c_in, kernel_size), jnp.float32)
        g1 = jax.random.uniform(ks[1], (c_out,), jnp.float32, 0.5, 1.5)
        b1 = 0.1 * jax.random.normal(ks[2], (c_out,), jnp.float32)
        v2 = 0.3 * jax.random.normal(ks[3], (c_out, c_out, kernel_size), jnp.float32)
        g2 = jax.random.uniform(ks[4], (c_out,), jnp.float32, 0.5, 1.5)
        b2 = 0.1 * jax.random.normal(ks[5], (c_out,), jnp.float32)

        w1 = _to_kio(_fold_weight_norm(v1, g1))   # fold in f32, then cast
        w2 = _to_kio(_fold_weight_norm(v2, g2))
        p = {
            "dilation": dil, "c_in": c_in, "c_out": c_out,
            "has_res": c_in != c_out,
            # reference copies (unpadded, f32)
            "w1": w1, "b1": b1, "w2": w2, "b2": b2,
            # kernel-ready copies (lane-padded im2col layout, bf16 W / f32 b)
            "w1_p": _pad_w_im2col(w1), "b1_p": _pad_b(b1),
            "w2_p": _pad_w_im2col(w2), "b2_p": _pad_b(b2),
        }
        if p["has_res"]:  # torch.nn.Conv1d(c_in, c_out, 1) residual
            wres = 0.3 * jax.random.normal(ks[6], (c_out, c_in, 1), jnp.float32)
            bres = 0.1 * jax.random.normal(ks[7], (c_out,), jnp.float32)
            wres_io = jnp.transpose(wres[:, :, 0], (1, 0))        # [c_in, c_out]
            p["wres"] = wres_io
            p["bres"] = bres
            wp = jnp.zeros((LANE, LANE), jnp.float32).at[:c_in, :c_out].set(wres_io)
            p["wres_p"] = wp.astype(MM_DTYPE)
            p["bres_p"] = _pad_b(bres)
        params.append(p)
    return params


# ----------------------------------------------------------------------------
# CausalCNN / CausalCNNEncoder forward (PyTorch NCL in / NCL out)
# ----------------------------------------------------------------------------
def causal_cnn_forward(x_ncl, params, kernel_size):
    B, c_in, L = x_ncl.shape
    h = jnp.transpose(x_ncl, (0, 2, 1)).astype(jnp.float32)    # [B, L, c_in]
    h = jnp.pad(h, ((0, 0), (0, 0), (0, LANE - c_in)))         # lane-dense, once
    blocks_meta = [{"dilation": p["dilation"], "has_res": p["has_res"]}
                   for p in params]
    call = _build_fused_call(B, L, kernel_size, blocks_meta)
    args = [h]
    for p in params:
        args += [p["w1_p"], p["b1_p"], p["w2_p"], p["b2_p"]]
        if p["has_res"]:
            args += [p["wres_p"], p["bres_p"]]
    out = call(*args)                                          # [B, L, LANE]
    c_out = params[-1]["c_out"]
    return jnp.transpose(out[:, :, :c_out], (0, 2, 1))         # [B, c_out, L]


# CausalCNNEncoder.network == Sequential(CausalCNN), so the encoder forward is
# exactly the CausalCNN forward.
causal_cnn_encoder_forward = causal_cnn_forward


# ----------------------------------------------------------------------------
# Pure-JAX reference mirroring the kernel's precision scheme
# (bf16 matmul operands, f32 accumulation / element-wise math)
# ----------------------------------------------------------------------------
def _ref_forward(x_ncl, params, K):
    h = jnp.transpose(x_ncl, (0, 2, 1)).astype(jnp.float32)    # [B, L, C]
    B, L, _ = h.shape
    for p in params:
        dil = p["dilation"]
        pad = (K - 1) * dil

        def conv(a, w_kio, b):
            ap = jnp.pad(a, ((0, 0), (pad, 0), (0, 0)))
            acc = jnp.zeros((B, L, w_kio.shape[-1]), jnp.float32)
            for k in range(K):
                acc = acc + jnp.einsum(
                    "blc,cd->bld",
                    ap[:, k * dil:k * dil + L, :].astype(MM_DTYPE),
                    w_kio[k].astype(MM_DTYPE),
                    preferred_element_type=jnp.float32)
            return acc + b

        h1 = _leaky_relu(conv(h, p["w1"], p["b1"]))
        h2 = _leaky_relu(conv(h1, p["w2"], p["b2"]))
        if p["has_res"]:
            res = jnp.einsum("blc,cd->bld", h.astype(MM_DTYPE),
                             p["wres"].astype(MM_DTYPE),
                             preferred_element_type=jnp.float32) + p["bres"]
        else:
            res = h
        h = h2 + res
    return jnp.transpose(h, (0, 2, 1))


if __name__ == "__main__":
    # CausalCNNEncoder(in_channels=4, channels=8, depth=2, out_channels=16, kernel_size=3)
    B, C_IN, L = 2, 4, 16
    CHANNELS, DEPTH, C_OUT, K = 8, 2, 16, 3

    key = jax.random.PRNGKey(0)
    kx, kp = jax.random.split(key)
    x = jax.random.normal(kx, (B, C_IN, L), jnp.float32)       # PyTorch [B, C, L]

    params = init_causal_cnn_params(kp, C_IN, CHANNELS, DEPTH, C_OUT, K)

    out = causal_cnn_encoder_forward(x, params, K)
    out = jax.block_until_ready(out)
    assert out.shape == (B, C_OUT, L), out.shape

    ref = _ref_forward(x, params, K)
    if not jnp.allclose(out, ref, atol=5e-3, rtol=5e-3):
        err = float(jnp.max(jnp.abs(out - ref)))
        raise AssertionError(f"Pallas output does not match reference (max err {err})")

    print("KERNEL_OK")
</pallas_src>

<mosaic_0001>
module attributes {stable_mosaic.version = 11 : i64} {
  func.func @kernel(%arg0: i32, %arg1: memref<1x16x128xf32, #tpu.memory_space<vmem>>, %arg2: memref<384x128xbf16, #tpu.memory_space<vmem>>, %arg3: memref<1x128xf32, #tpu.memory_space<vmem>>, %arg4: memref<384x128xbf16, #tpu.memory_space<vmem>>, %arg5: memref<1x128xf32, #tpu.memory_space<vmem>>, %arg6: memref<128x128xbf16, #tpu.memory_space<vmem>>, %arg7: memref<1x128xf32, #tpu.memory_space<vmem>>, %arg8: memref<384x128xbf16, #tpu.memory_space<vmem>>, %arg9: memref<1x128xf32, #tpu.memory_space<vmem>>, %arg10: memref<384x128xbf16, #tpu.memory_space<vmem>>, %arg11: memref<1x128xf32, #tpu.memory_space<vmem>>, %arg12: memref<384x128xbf16, #tpu.memory_space<vmem>>, %arg13: memref<1x128xf32, #tpu.memory_space<vmem>>, %arg14: memref<384x128xbf16, #tpu.memory_space<vmem>>, %arg15: memref<1x128xf32, #tpu.memory_space<vmem>>, %arg16: memref<128x128xbf16, #tpu.memory_space<vmem>>, %arg17: memref<1x128xf32, #tpu.memory_space<vmem>>, %arg18: memref<1x16x128xf32, #tpu.memory_space<vmem>>, %arg19: memref<24x128xf32, #tpu.memory_space<vmem>>) attributes {dimension_semantics = [#tpu.dimension_semantics<parallel>], iteration_bounds = array<i64: 2>, scalar_prefetch = 0 : i64, scratch_operands = 1 : i64, tpu.core_type = #tpu.core_type<tc>, window_params = [{transform_indices = @transform_0, window_bounds = array<i64: 1, 16, 128>}, {pipeline_mode = #tpu.pipeline_mode<synchronous>, transform_indices = @transform_1, window_bounds = array<i64: 384, 128>}, {pipeline_mode = #tpu.pipeline_mode<synchronous>, transform_indices = @transform_2, window_bounds = array<i64: 1, 128>}, {pipeline_mode = #tpu.pipeline_mode<synchronous>, transform_indices = @transform_3, window_bounds = array<i64: 384, 128>}, {pipeline_mode = #tpu.pipeline_mode<synchronous>, transform_indices = @transform_4, window_bounds = array<i64: 1, 128>}, {pipeline_mode = #tpu.pipeline_mode<synchronous>, transform_indices = @transform_5, window_bounds = array<i64: 128, 128>}, {pipeline_mode = #tpu.pipeline_mode<synchronous>, transform_indices = @transform_6, window_bounds = array<i64: 1, 128>}, {pipeline_mode = #tpu.pipeline_mode<synchronous>, transform_indices = @transform_7, window_bounds = array<i64: 384, 128>}, {pipeline_mode = #tpu.pipeline_mode<synchronous>, transform_indices = @transform_8, window_bounds = array<i64: 1, 128>}, {pipeline_mode = #tpu.pipeline_mode<synchronous>, transform_indices = @transform_9, window_bounds = array<i64: 384, 128>}, {pipeline_mode = #tpu.pipeline_mode<synchronous>, transform_indices = @transform_10, window_bounds = array<i64: 1, 128>}, {pipeline_mode = #tpu.pipeline_mode<synchronous>, transform_indices = @transform_11, window_bounds = array<i64: 384, 128>}, {pipeline_mode = #tpu.pipeline_mode<synchronous>, transform_indices = @transform_12, window_bounds = array<i64: 1, 128>}, {pipeline_mode = #tpu.pipeline_mode<synchronous>, transform_indices = @transform_13, window_bounds = array<i64: 384, 128>}, {pipeline_mode = #tpu.pipeline_mode<synchronous>, transform_indices = @transform_14, window_bounds = array<i64: 1, 128>}, {pipeline_mode = #tpu.pipeline_mode<synchronous>, transform_indices = @transform_15, window_bounds = array<i64: 128, 128>}, {pipeline_mode = #tpu.pipeline_mode<synchronous>, transform_indices = @transform_16, window_bounds = array<i64: 1, 128>}, {transform_indices = @transform_17, window_bounds = array<i64: 1, 16, 128>}]} {
    %cst = arith.constant 0.000000e+00 : f32
    %0 = vector.broadcast %cst : f32 to vector<8x128xf32>
    %c0 = arith.constant 0 : index
    %c0_0 = arith.constant 0 : index
    %1 = vector.load %arg19[%c0, %c0_0] : memref<24x128xf32, #tpu.memory_space<vmem>>, vector<8x128xf32>
    tpu.vector_store %arg19[%c0, %c0_0], %0 {strides = array<i32>} : memref<24x128xf32, #tpu.memory_space<vmem>>, vector<8x128xf32>,
    %c0_1 = arith.constant 0 : index
    %c0_2 = arith.constant 0 : index
    %c0_3 = arith.constant 0 : index
    %2 = vector.load %arg1[%c0_1, %c0_2, %c0_3] : memref<1x16x128xf32, #tpu.memory_space<vmem>>, vector<1x16x128xf32>
    %3 = vector.shape_cast %2 : vector<1x16x128xf32> to vector<16x128xf32>
    %c8 = arith.constant 8 : index
    %c0_4 = arith.constant 0 : index
    %4 = vector.load %arg19[%c8, %c0_4] : memref<24x128xf32, #tpu.memory_space<vmem>>, vector<16x128xf32>
    tpu.vector_store %arg19[%c8, %c0_4], %3 {strides = array<i32>} : memref<24x128xf32, #tpu.memory_space<vmem>>, vector<16x128xf32>,
    %c6 = arith.constant 6 : index
    %c0_5 = arith.constant 0 : index
    %5 = vector.load %arg19[%c6, %c0_5] : memref<24x128xf32, #tpu.memory_space<vmem>>, vector<16x128xf32>
    %c7 = arith.constant 7 : index
    %c0_6 = arith.constant 0 : index
    %6 = vector.load %arg19[%c7, %c0_6] : memref<24x128xf32, #tpu.memory_space<vmem>>, vector<16x128xf32>
    %c8_7 = arith.constant 8 : index
    %c0_8 = arith.constant 0 : index
    %7 = vector.load %arg19[%c8_7, %c0_8] : memref<24x128xf32, #tpu.memory_space<vmem>>, vector<16x128xf32>
    %8 = tpu.concatenate %5, %6, %7 in 1 : vector<16x128xf32>, vector<16x128xf32>, vector<16x128xf32> -> vector<16x384xf32>
    %9 = arith.truncf %8 : vector<16x384xf32> to vector<16x384xbf16>
    %c0_9 = arith.constant 0 : index
    %c0_10 = arith.constant 0 : index
    %10 = vector.load %arg2[%c0_9, %c0_10] : memref<384x128xbf16, #tpu.memory_space<vmem>>, vector<384x128xbf16>
    %cst_11 = arith.constant dense<0.000000e+00> : vector<16x128xf32>
    %11 = tpu.matmul %9, %10, %cst_11 {dimension_numbers = #tpu.dot_dimension_numbers<[1], [0], [0], [1], [0, 0, 1, 1], [], []>} : vector<16x384xbf16>, vector<384x128xbf16>, vector<16x128xf32> -> vector<16x128xf32>
    %c0_12 = arith.constant 0 : index
    %c0_13 = arith.constant 0 : index
    %12 = vector.load %arg3[%c0_12, %c0_13] : memref<1x128xf32, #tpu.memory_space<vmem>>, vector<1x128xf32>
    %13 = vector.broadcast %12 : vector<1x128xf32> to vector<16x128xf32>
    %14 = arith.addf %11, %13 : vector<16x128xf32>
    %cst_14 = arith.constant 0.000000e+00 : f32
    %15 = vector.broadcast %cst_14 : f32 to vector<16x128xf32>
    %16 = arith.cmpf oge, %14, %15 : vector<16x128xf32>
    %cst_15 = arith.constant 0.00999999977 : f32
    %17 = vector.broadcast %cst_15 : f32 to vector<16x128xf32>
    %18 = arith.mulf %17, %14 : vector<16x128xf32>
    %19 = arith.select %16, %14, %18 : vector<16x128xi1>, vector<16x128xf32>
    %c8_16 = arith.constant 8 : index
    %c0_17 = arith.constant 0 : index
    %20 = vector.load %arg19[%c8_16, %c0_17] : memref<24x128xf32, #tpu.memory_space<vmem>>, vector<16x128xf32>
    tpu.vector_store %arg19[%c8_16, %c0_17], %19 {strides = array<i32>} : memref<24x128xf32, #tpu.memory_space<vmem>>, vector<16x128xf32>,
    %c6_18 = arith.constant 6 : index
    %c0_19 = arith.constant 0 : index
    %21 = vector.load %arg19[%c6_18, %c0_19] : memref<24x128xf32, #tpu.memory_space<vmem>>, vector<16x128xf32>
    %c7_20 = arith.constant 7 : index
    %c0_21 = arith.constant 0 : index
    %22 = vector.load %arg19[%c7_20, %c0_21] : memref<24x128xf32, #tpu.memory_space<vmem>>, vector<16x128xf32>
    %c8_22 = arith.constant 8 : index
    %c0_23 = arith.constant 0 : index
    %23 = vector.load %arg19[%c8_22, %c0_23] : memref<24x128xf32, #tpu.memory_space<vmem>>, vector<16x128xf32>
    %24 = tpu.concatenate %21, %22, %23 in 1 : vector<16x128xf32>, vector<16x128xf32>, vector<16x128xf32> -> vector<16x384xf32>
    %25 = arith.truncf %24 : vector<16x384xf32> to vector<16x384xbf16>
    %c0_24 = arith.constant 0 : index
    %c0_25 = arith.constant 0 : index
    %26 = vector.load %arg4[%c0_24, %c0_25] : memref<384x128xbf16, #tpu.memory_space<vmem>>, vector<384x128xbf16>
    %cst_26 = arith.constant dense<0.000000e+00> : vector<16x128xf32>
    %27 = tpu.matmul %25, %26, %cst_26 {dimension_numbers = #tpu.dot_dimension_numbers<[1], [0], [0], [1], [0, 0, 1, 1], [], []>} : vector<16x384xbf16>, vector<384x128xbf16>, vector<16x128xf32> -> vector<16x128xf32>
    %c0_27 = arith.constant 0 : index
    %c0_28 = arith.constant 0 : index
    %28 = vector.load %arg5[%c0_27, %c0_28] : memref<1x128xf32, #tpu.memory_space<vmem>>, vector<1x128xf32>
    %29 = vector.broadcast %28 : vector<1x128xf32> to vector<16x128xf32>
    %30 = arith.addf %27, %29 : vector<16x128xf32>
    %cst_29 = arith.constant 0.000000e+00 : f32
    %31 = vector.broadcast %cst_29 : f32 to vector<16x128xf32>
    %32 = arith.cmpf oge, %30, %31 : vector<16x128xf32>
    %cst_30 = arith.constant 0.00999999977 : f32
    %33 = vector.broadcast %cst_30 : f32 to vector<16x128xf32>
    %34 = arith.mulf %33, %30 : vector<16x128xf32>
    %35 = arith.select %32, %30, %34 : vector<16x128xi1>, vector<16x128xf32>
    %36 = arith.truncf %3 : vector<16x128xf32> to vector<16x128xbf16>
    %c0_31 = arith.constant 0 : index
    %c0_32 = arith.constant 0 : index
    %37 = vector.load %arg6[%c0_31, %c0_32] : memref<128x128xbf16, #tpu.memory_space<vmem>>, vector<128x128xbf16>
    %cst_33 = arith.constant dense<0.000000e+00> : vector<16x128xf32>
    %38 = tpu.matmul %36, %37, %cst_33 {dimension_numbers = #tpu.dot_dimension_numbers<[1], [0], [0], [1], [0, 0, 1, 1], [], []>} : vector<16x128xbf16>, vector<128x128xbf16>, vector<16x128xf32> -> vector<16x128xf32>
    %c0_34 = arith.constant 0 : index
    %c0_35 = arith.constant 0 : index
    %39 = vector.load %arg7[%c0_34, %c0_35] : memref<1x128xf32, #tpu.memory_space<vmem>>, vector<1x128xf32>
    %40 = vector.broadcast %39 : vector<1x128xf32> to vector<16x128xf32>
    %41 = arith.addf %38, %40 : vector<16x128xf32>
    %42 = arith.addf %35, %41 : vector<16x128xf32>
    %c8_36 = arith.constant 8 : index
    %c0_37 = arith.constant 0 : index
    %43 = vector.load %arg19[%c8_36, %c0_37] : memref<24x128xf32, #tpu.memory_space<vmem>>, vector<16x128xf32>
    tpu.vector_store %arg19[%c8_36, %c0_37], %42 {strides = array<i32>} : memref<24x128xf32, #tpu.memory_space<vmem>>, vector<16x128xf32>,
    %c4 = arith.constant 4 : index
    %c0_38 = arith.constant 0 : index
    %44 = vector.load %arg19[%c4, %c0_38] : memref<24x128xf32, #tpu.memory_space<vmem>>, vector<16x128xf32>
    %c6_39 = arith.constant 6 : index
    %c0_40 = arith.constant 0 : index
    %45 = vector.load %arg19[%c6_39, %c0_40] : memref<24x128xf32, #tpu.memory_space<vmem>>, vector<16x128xf32>
    %c8_41 = arith.constant 8 : index
    %c0_42 = arith.constant 0 : index
    %46 = vector.load %arg19[%c8_41, %c0_42] : memref<24x128xf32, #tpu.memory_space<vmem>>, vector<16x128xf32>
    %47 = tpu.concatenate %44, %45, %46 in 1 : vector<16x128xf32>, vector<16x128xf32>, vector<16x128xf32> -> vector<16x384xf32>
    %48 = arith.truncf %47 : vector<16x384xf32> to vector<16x384xbf16>
    %c0_43 = arith.constant 0 : index
    %c0_44 = arith.constant 0 : index
    %49 = vector.load %arg8[%c0_43, %c0_44] : memref<384x128xbf16, #tpu.memory_space<vmem>>, vector<384x128xbf16>
    %cst_45 = arith.constant dense<0.000000e+00> : vector<16x128xf32>
    %50 = tpu.matmul %48, %49, %cst_45 {dimension_numbers = #tpu.dot_dimension_numbers<[1], [0], [0], [1], [0, 0, 1, 1], [], []>} : vector<16x384xbf16>, vector<384x128xbf16>, vector<16x128xf32> -> vector<16x128xf32>
    %c0_46 = arith.constant 0 : index
    %c0_47 = arith.constant 0 : index
    %51 = vector.load %arg9[%c0_46, %c0_47] : memref<1x128xf32, #tpu.memory_space<vmem>>, vector<1x128xf32>
    %52 = vector.broadcast %51 : vector<1x128xf32> to vector<16x128xf32>
    %53 = arith.addf %50, %52 : vector<16x128xf32>
    %cst_48 = arith.constant 0.000000e+00 : f32
    %54 = vector.broadcast %cst_48 : f32 to vector<16x128xf32>
    %55 = arith.cmpf oge, %53, %54 : vector<16x128xf32>
    %cst_49 = arith.constant 0.00999999977 : f32
    %56 = vector.broadcast %cst_49 : f32 to vector<16x128xf32>
    %57 = arith.mulf %56, %53 : vector<16x128xf32>
    %58 = arith.select %55, %53, %57 : vector<16x128xi1>, vector<16x128xf32>
    %c8_50 = arith.constant 8 : index
    %c0_51 = arith.constant 0 : index
    %59 = vector.load %arg19[%c8_50, %c0_51] : memref<24x128xf32, #tpu.memory_space<vmem>>, vector<16x128xf32>
    tpu.vector_store %arg19[%c8_50, %c0_51], %58 {strides = array<i32>} : memref<24x128xf32, #tpu.memory_space<vmem>>, vector<16x128xf32>,
    %c4_52 = arith.constant 4 : index
    %c0_53 = arith.constant 0 : index
    %60 = vector.load %arg19[%c4_52, %c0_53] : memref<24x128xf32, #tpu.memory_space<vmem>>, vector<16x128xf32>
    %c6_54 = arith.constant 6 : index
    %c0_55 = arith.constant 0 : index
    %61 = vector.load %arg19[%c6_54, %c0_55] : memref<24x128xf32, #tpu.memory_space<vmem>>, vector<16x128xf32>
    %c8_56 = arith.constant 8 : index
    %c0_57 = arith.constant 0 : index
    %62 = vector.load %arg19[%c8_56, %c0_57] : memref<24x128xf32, #tpu.memory_space<vmem>>, vector<16x128xf32>
    %63 = tpu.concatenate %60, %61, %62 in 1 : vector<16x128xf32>, vector<16x128xf32>, vector<16x128xf32> -> vector<16x384xf32>
    %64 = arith.truncf %63 : vector<16x384xf32> to vector<16x384xbf16>
    %c0_58 = arith.constant 0 : index
    %c0_59 = arith.constant 0 : index
    %65 = vector.load %arg10[%c0_58, %c0_59] : memref<384x128xbf16, #tpu.memory_space<vmem>>, vector<384x128xbf16>
    %cst_60 = arith.constant dense<0.000000e+00> : vector<16x128xf32>
    %66 = tpu.matmul %64, %65, %cst_60 {dimension_numbers = #tpu.dot_dimension_numbers<[1], [0], [0], [1], [0, 0, 1, 1], [], []>} : vector<16x384xbf16>, vector<384x128xbf16>, vector<16x128xf32> -> vector<16x128xf32>
    %c0_61 = arith.constant 0 : index
    %c0_62 = arith.constant 0 : index
    %67 = vector.load %arg11[%c0_61, %c0_62] : memref<1x128xf32, #tpu.memory_space<vmem>>, vector<1x128xf32>
    %68 = vector.broadcast %67 : vector<1x128xf32> to vector<16x128xf32>
    %69 = arith.addf %66, %68 : vector<16x128xf32>
    %cst_63 = arith.constant 0.000000e+00 : f32
    %70 = vector.broadcast %cst_63 : f32 to vector<16x128xf32>
    %71 = arith.cmpf oge, %69, %70 : vector<16x128xf32>
    %cst_64 = arith.constant 0.00999999977 : f32
    %72 = vector.broadcast %cst_64 : f32 to vector<16x128xf32>
    %73 = arith.mulf %72, %69 : vector<16x128xf32>
    %74 = arith.select %71, %69, %73 : vector<16x128xi1>, vector<16x128xf32>
    %75 = arith.addf %74, %42 : vector<16x128xf32>
    %c8_65 = arith.constant 8 : index
    %c0_66 = arith.constant 0 : index
    %76 = vector.load %arg19[%c8_65, %c0_66] : memref<24x128xf32, #tpu.memory_space<vmem>>, vector<16x128xf32>
    tpu.vector_store %arg19[%c8_65, %c0_66], %75 {strides = array<i32>} : memref<24x128xf32, #tpu.memory_space<vmem>>, vector<16x128xf32>,
    %c0_67 = arith.constant 0 : index
    %c0_68 = arith.constant 0 : index
    %77 = vector.load %arg19[%c0_67, %c0_68] : memref<24x128xf32, #tpu.memory_space<vmem>>, vector<16x128xf32>
    %c4_69 = arith.constant 4 : index
    %c0_70 = arith.constant 0 : index
    %78 = vector.load %arg19[%c4_69, %c0_70] : memref<24x128xf32, #tpu.memory_space<vmem>>, vector<16x128xf32>
    %c8_71 = arith.constant 8 : index
    %c0_72 = arith.constant 0 : index
    %79 = vector.load %arg19[%c8_71, %c0_72] : memref<24x128xf32, #tpu.memory_space<vmem>>, vector<16x128xf32>
    %80 = tpu.concatenate %77, %78, %79 in 1 : vector<16x128xf32>, vector<16x128xf32>, vector<16x128xf32> -> vector<16x384xf32>
    %81 = arith.truncf %80 : vector<16x384xf32> to vector<16x384xbf16>
    %c0_73 = arith.constant 0 : index
    %c0_74 = arith.constant 0 : index
    %82 = vector.load %arg12[%c0_73, %c0_74] : memref<384x128xbf16, #tpu.memory_space<vmem>>, vector<384x128xbf16>
    %cst_75 = arith.constant dense<0.000000e+00> : vector<16x128xf32>
    %83 = tpu.matmul %81, %82, %cst_75 {dimension_numbers = #tpu.dot_dimension_numbers<[1], [0], [0], [1], [0, 0, 1, 1], [], []>} : vector<16x384xbf16>, vector<384x128xbf16>, vector<16x128xf32> -> vector<16x128xf32>
    %c0_76 = arith.constant 0 : index
    %c0_77 = arith.constant 0 : index
    %84 = vector.load %arg13[%c0_76, %c0_77] : memref<1x128xf32, #tpu.memory_space<vmem>>, vector<1x128xf32>
    %85 = vector.broadcast %84 : vector<1x128xf32> to vector<16x128xf32>
    %86 = arith.addf %83, %85 : vector<16x128xf32>
    %cst_78 = arith.constant 0.000000e+00 : f32
    %87 = vector.broadcast %cst_78 : f32 to vector<16x128xf32>
    %88 = arith.cmpf oge, %86, %87 : vector<16x128xf32>
    %cst_79 = arith.constant 0.00999999977 : f32
    %89 = vector.broadcast %cst_79 : f32 to vector<16x128xf32>
    %90 = arith.mulf %89, %86 : vector<16x128xf32>
    %91 = arith.select %88, %86, %90 : vector<16x128xi1>, vector<16x128xf32>
    %c8_80 = arith.constant 8 : index
    %c0_81 = arith.constant 0 : index
    %92 = vector.load %arg19[%c8_80, %c0_81] : memref<24x128xf32, #tpu.memory_space<vmem>>, vector<16x128xf32>
    tpu.vector_store %arg19[%c8_80, %c0_81], %91 {strides = array<i32>} : memref<24x128xf32, #tpu.memory_space<vmem>>, vector<16x128xf32>,
    %c0_82 = arith.constant 0 : index
    %c0_83 = arith.constant 0 : index
    %93 = vector.load %arg19[%c0_82, %c0_83] : memref<24x128xf32, #tpu.memory_space<vmem>>, vector<16x128xf32>
    %c4_84 = arith.constant 4 : index
    %c0_85 = arith.constant 0 : index
    %94 = vector.load %arg19[%c4_84, %c0_85] : memref<24x128xf32, #tpu.memory_space<vmem>>, vector<16x128xf32>
    %c8_86 = arith.constant 8 : index
    %c0_87 = arith.constant 0 : index
    %95 = vector.load %arg19[%c8_86, %c0_87] : memref<24x128xf32, #tpu.memory_space<vmem>>, vector<16x128xf32>
    %96 = tpu.concatenate %93, %94, %95 in 1 : vector<16x128xf32>, vector<16x128xf32>, vector<16x128xf32> -> vector<16x384xf32>
    %97 = arith.truncf %96 : vector<16x384xf32> to vector<16x384xbf16>
    %c0_88 = arith.constant 0 : index
    %c0_89 = arith.constant 0 : index
    %98 = vector.load %arg14[%c0_88, %c0_89] : memref<384x128xbf16, #tpu.memory_space<vmem>>, vector<384x128xbf16>
    %cst_90 = arith.constant dense<0.000000e+00> : vector<16x128xf32>
    %99 = tpu.matmul %97, %98, %cst_90 {dimension_numbers = #tpu.dot_dimension_numbers<[1], [0], [0], [1], [0, 0, 1, 1], [], []>} : vector<16x384xbf16>, vector<384x128xbf16>, vector<16x128xf32> -> vector<16x128xf32>
    %c0_91 = arith.constant 0 : index
    %c0_92 = arith.constant 0 : index
    %100 = vector.load %arg15[%c0_91, %c0_92] : memref<1x128xf32, #tpu.memory_space<vmem>>, vector<1x128xf32>
    %101 = vector.broadcast %100 : vector<1x128xf32> to vector<16x128xf32>
    %102 = arith.addf %99, %101 : vector<16x128xf32>
    %cst_93 = arith.constant 0.000000e+00 : f32
    %103 = vector.broadcast %cst_93 : f32 to vector<16x128xf32>
    %104 = arith.cmpf oge, %102, %103 : vector<16x128xf32>
    %cst_94 = arith.constant 0.00999999977 : f32
    %105 = vector.broadcast %cst_94 : f32 to vector<16x128xf32>
    %106 = arith.mulf %105, %102 : vector<16x128xf32>
    %107 = arith.select %104, %102, %106 : vector<16x128xi1>, vector<16x128xf32>
    %108 = arith.truncf %75 : vector<16x128xf32> to vector<16x128xbf16>
    %c0_95 = arith.constant 0 : index
    %c0_96 = arith.constant 0 : index
    %109 = vector.load %arg16[%c0_95, %c0_96] : memref<128x128xbf16, #tpu.memory_space<vmem>>, vector<128x128xbf16>
    %cst_97 = arith.constant dense<0.000000e+00> : vector<16x128xf32>
    %110 = tpu.matmul %108, %109, %cst_97 {dimension_numbers = #tpu.dot_dimension_numbers<[1], [0], [0], [1], [0, 0, 1, 1], [], []>} : vector<16x128xbf16>, vector<128x128xbf16>, vector<16x128xf32> -> vector<16x128xf32>
    %c0_98 = arith.constant 0 : index
    %c0_99 = arith.constant 0 : index
    %111 = vector.load %arg17[%c0_98, %c0_99] : memref<1x128xf32, #tpu.memory_space<vmem>>, vector<1x128xf32>
    %112 = vector.broadcast %111 : vector<1x128xf32> to vector<16x128xf32>
    %113 = arith.addf %110, %112 : vector<16x128xf32>
    %114 = arith.addf %107, %113 : vector<16x128xf32>
    %c0_100 = arith.constant 0 : index
    %c0_101 = arith.constant 0 : index
    %c0_102 = arith.constant 0 : index
    %115 = vector.load %arg18[%c0_100, %c0_101, %c0_102] : memref<1x16x128xf32, #tpu.memory_space<vmem>>, vector<1x16x128xf32>
    %116 = vector.shape_cast %115 : vector<1x16x128xf32> to vector<16x128xf32>
    %117 = vector.shape_cast %114 : vector<16x128xf32> to vector<1x16x128xf32>
    tpu.vector_store %arg18[%c0_100, %c0_101, %c0_102], %117 {strides = array<i32>} : memref<1x16x128xf32, #tpu.memory_space<vmem>>, vector<1x16x128xf32>,
    return
  }
  func.func @transform_0(%arg0: i32) -> (i32, i32, i32) {
    %c0_i32 = arith.constant 0 : i32
    %c0_i32_0 = arith.constant 0 : i32
    %c0_i32_1 = arith.constant 0 : i32
    return %arg0, %c0_i32, %c0_i32_0 : i32, i32, i32
  }
  func.func @transform_1(%arg0: i32) -> (i32, i32) {
    %c0_i32 = arith.constant 0 : i32
    %c0_i32_0 = arith.constant 0 : i32
    %c0_i32_1 = arith.constant 0 : i32
    return %c0_i32, %c0_i32_0 : i32, i32
  }
  func.func @transform_2(%arg0: i32) -> (i32, i32) {
    %c0_i32 = arith.constant 0 : i32
    %c0_i32_0 = arith.constant 0 : i32
    %c0_i32_1 = arith.constant 0 : i32
    return %c0_i32, %c0_i32_0 : i32, i32
  }
  func.func @transform_3(%arg0: i32) -> (i32, i32) {
    %c0_i32 = arith.constant 0 : i32
    %c0_i32_0 = arith.constant 0 : i32
    %c0_i32_1 = arith.constant 0 : i32
    return %c0_i32, %c0_i32_0 : i32, i32
  }
  func.func @transform_4(%arg0: i32) -> (i32, i32) {
    %c0_i32 = arith.constant 0 : i32
    %c0_i32_0 = arith.constant 0 : i32
    %c0_i32_1 = arith.constant 0 : i32
    return %c0_i32, %c0_i32_0 : i32, i32
  }
  func.func @transform_5(%arg0: i32) -> (i32, i32) {
    %c0_i32 = arith.constant 0 : i32
    %c0_i32_0 = arith.constant 0 : i32
    %c0_i32_1 = arith.constant 0 : i32
    return %c0_i32, %c0_i32_0 : i32, i32
  }
  func.func @transform_6(%arg0: i32) -> (i32, i32) {
    %c0_i32 = arith.constant 0 : i32
    %c0_i32_0 = arith.constant 0 : i32
    %c0_i32_1 = arith.constant 0 : i32
    return %c0_i32, %c0_i32_0 : i32, i32
  }
  func.func @transform_7(%arg0: i32) -> (i32, i32) {
    %c0_i32 = arith.constant 0 : i32
    %c0_i32_0 = arith.constant 0 : i32
    %c0_i32_1 = arith.constant 0 : i32
    return %c0_i32, %c0_i32_0 : i32, i32
  }
  func.func @transform_8(%arg0: i32) -> (i32, i32) {
    %c0_i32 = arith.constant 0 : i32
    %c0_i32_0 = arith.constant 0 : i32
    %c0_i32_1 = arith.constant 0 : i32
    return %c0_i32, %c0_i32_0 : i32, i32
  }
  func.func @transform_9(%arg0: i32) -> (i32, i32) {
    %c0_i32 = arith.constant 0 : i32
    %c0_i32_0 = arith.constant 0 : i32
    %c0_i32_1 = arith.constant 0 : i32
    return %c0_i32, %c0_i32_0 : i32, i32
  }
  func.func @transform_10(%arg0: i32) -> (i32, i32) {
    %c0_i32 = arith.constant 0 : i32
    %c0_i32_0 = arith.constant 0 : i32
    %c0_i32_1 = arith.constant 0 : i32
    return %c0_i32, %c0_i32_0 : i32, i32
  }
  func.func @transform_11(%arg0: i32) -> (i32, i32) {
    %c0_i32 = arith.constant 0 : i32
    %c0_i32_0 = arith.constant 0 : i32
    %c0_i32_1 = arith.constant 0 : i32
    return %c0_i32, %c0_i32_0 : i32, i32
  }
  func.func @transform_12(%arg0: i32) -> (i32, i32) {
    %c0_i32 = arith.constant 0 : i32
    %c0_i32_0 = arith.constant 0 : i32
    %c0_i32_1 = arith.constant 0 : i32
    return %c0_i32, %c0_i32_0 : i32, i32
  }
  func.func @transform_13(%arg0: i32) -> (i32, i32) {
    %c0_i32 = arith.constant 0 : i32
    %c0_i32_0 = arith.constant 0 : i32
    %c0_i32_1 = arith.constant 0 : i32
    return %c0_i32, %c0_i32_0 : i32, i32
  }
  func.func @transform_14(%arg0: i32) -> (i32, i32) {
    %c0_i32 = arith.constant 0 : i32
    %c0_i32_0 = arith.constant 0 : i32
    %c0_i32_1 = arith.constant 0 : i32
    return %c0_i32, %c0_i32_0 : i32, i32
  }
  func.func @transform_15(%arg0: i32) -> (i32, i32) {
    %c0_i32 = arith.constant 0 : i32
    %c0_i32_0 = arith.constant 0 : i32
    %c0_i32_1 = arith.constant 0 : i32
    return %c0_i32, %c0_i32_0 : i32, i32
  }
  func.func @transform_16(%arg0: i32) -> (i32, i32) {
    %c0_i32 = arith.constant 0 : i32
    %c0_i32_0 = arith.constant 0 : i32
    %c0_i32_1 = arith.constant 0 : i32
    return %c0_i32, %c0_i32_0 : i32, i32
  }
  func.func @transform_17(%arg0: i32) -> (i32, i32, i32) {
    %c0_i32 = arith.constant 0 : i32
    %c0_i32_0 = arith.constant 0 : i32
    %c0_i32_1 = arith.constant 0 : i32
    return %arg0, %c0_i32, %c0_i32_0 : i32, i32, i32
  }
}

</mosaic_0001>

<llo_original>
// kernel: tpu_custom_call.1
$region0: #{tpu_custom_call.1}
  #allocation0 [shape = 'u32[]', space=smem, size = 0x4, offset = 0x4, fixed_abs, tag = 'smem constant byte address 0x4 - core index']
  #allocation1 [shape = 'u32[144,128]{1,0:T(1,128)}', space=vmem, size = 0x12000, scoped, tag = 'internal scratch']
  #allocation2 [shape = 'f32[24,128]{1,0:T(8,128)}', space=vmem, size = 0x3000, scoped, tag = 'scratch operand']
  %s0 = inlined_call_operand.hbm [shape: f32[2,16,128], index: 0, kind: input, shape index: {}]
  %s1 = inlined_call_operand.hbm [shape: bf16[384,128], index: 1, kind: input, shape index: {}]
  %s2 = inlined_call_operand.vmem [shape: f32[1,128], index: 2, kind: input, shape index: {}]
  %s3 = inlined_call_operand.hbm [shape: bf16[384,128], index: 3, kind: input, shape index: {}]
  %s4 = inlined_call_operand.vmem [shape: f32[1,128], index: 4, kind: input, shape index: {}]
  %s5 = inlined_call_operand.hbm [shape: bf16[128,128], index: 5, kind: input, shape index: {}]
  %s6 = inlined_call_operand.vmem [shape: f32[1,128], index: 6, kind: input, shape index: {}]
  %s7 = inlined_call_operand.hbm [shape: bf16[384,128], index: 7, kind: input, shape index: {}]
  %s8 = inlined_call_operand.vmem [shape: f32[1,128], index: 8, kind: input, shape index: {}]
  %s9 = inlined_call_operand.hbm [shape: bf16[384,128], index: 9, kind: input, shape index: {}]
  %s10 = inlined_call_operand.vmem [shape: f32[1,128], index: 10, kind: input, shape index: {}]
  %s11 = inlined_call_operand.hbm [shape: bf16[384,128], index: 11, kind: input, shape index: {}]
  %s12 = inlined_call_operand.vmem [shape: f32[1,128], index: 12, kind: input, shape index: {}]
  %s13 = inlined_call_operand.hbm [shape: bf16[384,128], index: 13, kind: input, shape index: {}]
  %s14 = inlined_call_operand.vmem [shape: f32[1,128], index: 14, kind: input, shape index: {}]
  %s15 = inlined_call_operand.hbm [shape: bf16[128,128], index: 15, kind: input, shape index: {}]
  %s16 = inlined_call_operand.vmem [shape: f32[1,128], index: 16, kind: input, shape index: {}]
  %s17 = inlined_call_operand.hbm [shape: f32[2,16,128], index: 17, kind: output, shape index: {}]
  %s18 = sld [smem:[#allocation0]]
  $region137: #{tpu_custom_call.1} parent=0
    _
  %s20 = ssub.s32 1, %s18
  %s21 = scalar_select 0, %s20, %s18
  $region1: #{tpu_custom_call.1} parent=0
    #allocation3 [shape = 'u8[16384]{0}', space=vmem, size = 0x4000, scoped, tag = 'input window, operand 0']
    #allocation4 [shape = 's32[2]{0}', space=sflag, size = 0x8, scoped, tag = 'scoped memory for tpu_custom_call.1']
    #allocation5 [shape = 's32[2]{0}', space=sflag, size = 0x8, scoped, tag = 'scoped memory for tpu_custom_call.1']
    #allocation6 [shape = 'u8[98304]{0}', space=vmem, size = 0x18000, scoped, tag = 'input window, operand 1, single buffered']
    #allocation7 [shape = 's32[1]{0}', space=sflag, size = 0x4, scoped, tag = 'scoped memory for tpu_custom_call.1']
    #allocation8 [shape = 'u8[98304]{0}', space=vmem, size = 0x18000, scoped, tag = 'input window, operand 3, single buffered']
    #allocation9 [shape = 'u8[32768]{0}', space=vmem, size = 0x8000, scoped, tag = 'input window, operand 5, single buffered']
    #allocation10 [shape = 's32[1]{0}', space=sflag, size = 0x4, scoped, tag = 'scoped memory for tpu_custom_call.1']
    #allocation11 [shape = 'u8[98304]{0}', space=vmem, size = 0x18000, scoped, tag = 'input window, operand 7, single buffered']
    #allocation12 [shape = 'u8[98304]{0}', space=vmem, size = 0x18000, scoped, tag = 'input window, operand 9, single buffered']
    #allocation13 [shape = 's32[1]{0}', space=sflag, size = 0x4, scoped, tag = 'scoped memory for tpu_custom_call.1']
    #allocation14 [shape = 'u8[98304]{0}', space=vmem, size = 0x18000, scoped, tag = 'input window, operand 11, single buffered']
    #allocation15 [shape = 'u8[98304]{0}', space=vmem, size = 0x18000, scoped, tag = 'input window, operand 13, single buffered']
    #allocation16 [shape = 's32[1]{0}', space=sflag, size = 0x4, scoped, tag = 'scoped memory for tpu_custom_call.1']
    #allocation17 [shape = 'u8[32768]{0}', space=vmem, size = 0x8000, scoped, tag = 'input window, operand 15, single buffered']
    #allocation18 [shape = 'u8[16384]{0}', space=vmem, size = 0x4000, scoped, tag = 'output window, operand 0']
    %22 = vsyncpa [#allocation4], 0
    %s23 = scalar_lea.sflag [#allocation4], 1
    %24 = vsyncpa %s23, 0
    %25 = vsyncpa [#allocation7], 0
    %26 = vsyncpa [#allocation10], 0
    %27 = vsyncpa [#allocation13], 0
    %28 = vsyncpa [#allocation16], 0
    %29 = vsyncpa [#allocation5], 0
    %s30 = scalar_lea.sflag [#allocation5], 1
    %31 = vsyncpa %s30, 0
    loop: start=0, step=1, limit=4
    $region2: #{tpu_custom_call.1} parent=1 // loop_pre_header
      _
    $region3: #{tpu_custom_call.1} parent=1 // loop_header
      %s33 = sphi 0, %s37
      %p34 = scmp.ge.s32.totalorder %s33, 4
      %s43 = sphi 0, %s45
      %s46 = sphi 0, %s43
      %s47 = sphi 0, %s46
      %s63 = sphi 0, %s47
      %s67 = sphi 0, %s67
      %s69 = sphi 0, %s67
      %s70 = sphi 0, %s69
      %s84 = sphi 0, %s70
      %s88 = sphi 0, %s88
      %s90 = sphi 0, %s88
      %s91 = sphi 0, %s90
      %s105 = sphi 0, %s91
      %s109 = sphi 0, %s109
      %s111 = sphi 0, %s109
      %s112 = sphi 0, %s111
      %s126 = sphi 0, %s112
      %s130 = sphi 0, %s130
      %s132 = sphi 0, %s130
      %s133 = sphi 0, %s132
      %s147 = sphi 0, %s133
      %s151 = sphi 0, %s151
      %s153 = sphi 0, %s151
      %s154 = sphi 0, %s153
      %s168 = sphi 0, %s154
      %s172 = sphi 0, %s172
      %s174 = sphi 0, %s172
      %s175 = sphi 0, %s174
      %s189 = sphi 0, %s175
      %s193 = sphi 0, %s193
      %s195 = sphi 0, %s193
      %s196 = sphi 0, %s195
      %s210 = sphi 0, %s196
      %s214 = sphi 0, %s214
      %s216 = sphi 0, %s214
      %s217 = sphi 0, %s216
      %s231 = sphi 0, %s217
      %s235 = sphi 0, %s235
      %s237 = sphi 0, %s235
      %s238 = sphi 0, %s237
      %s252 = sphi 0, %s238
      %s256 = sphi 0, %s256
      %s258 = sphi 0, %s256
      %s259 = sphi 0, %s258
      %s273 = sphi 0, %s259
      %s277 = sphi 0, %s277
      %s279 = sphi 0, %s277
      %s280 = sphi 0, %s279
      %s294 = sphi 0, %s280
      %s298 = sphi 0, %s298
      %s300 = sphi 0, %s298
      %s301 = sphi 0, %s300
      %s315 = sphi 0, %s301
      %s319 = sphi 0, %s319
      %s321 = sphi 0, %s319
      %s322 = sphi 0, %s321
      %s336 = sphi 0, %s322
      %s340 = sphi 0, %s340
      %s342 = sphi 0, %s340
      %s343 = sphi 0, %s342
      %s357 = sphi 0, %s343
      %s361 = sphi 0, %s361
      %s363 = sphi 0, %s361
      %s364 = sphi 0, %s363
      %s378 = sphi 0, %s364
      %s382 = sphi 0, %s382
      %s384 = sphi 0, %s382
      %s385 = sphi 0, %s384
      %s399 = sphi 0, %s385
      %s405 = sphi 0, %s407
      %s408 = sphi 0, %s405
      %s409 = sphi 0, %s408
      %s425 = sphi 0, %s409
    $region4: #{tpu_custom_call.1} parent=1 // loop_header_branch
      %36 = sbr.rel (%p34) target = $region8
    $region5: #{tpu_custom_call.1} parent=1 // loop_body
      %s38 = ssub.s32 %s33, 1
      %s39 = ssub.s32 %s33, 2
      %s40 = sadd.s32 %s33, 1
      %s41 = ssub.s32 %s33, %s40
      %p42 = scmp.eq.s32.totalorder %s41, 0
      %s44 = sadd.s32 %s43, 1
      %s45 = scalar_select %p42, %s43, %s44
      %p48 = pneg %p42
      %p49 = scmp.eq.s32.totalorder %s33, 1
      %p50 = por %p48, %p49
      %p51 = scmp.ne.s32.totalorder %s43, %s46
      %p52 = scmp.eq.s32.totalorder %s33, 0
      %p53 = por %p51, %p52
      %p54 = scmp.ne.s32.totalorder %s43, %s46
      %p55 = scmp.eq.s32.totalorder %s38, 1
      %p56 = por %p54, %p55
      %p57 = scmp.ne.s32.totalorder %s46, %s47
      %p58 = scmp.eq.s32.totalorder %s38, 0
      %p59 = por %p57, %p58
      %p60 = scmp.ne.s32.totalorder %s46, %s47
      %p61 = scmp.eq.s32.totalorder %s39, 1
      %p62 = por %p60, %p61
      %p64 = scmp.ne.s32.totalorder %s47, %s63
      %p65 = scmp.eq.s32.totalorder %s39, 0
      %p66 = por %p64, %p65
      %s68 = sadd.s32 %s67, 1
      %p71 = scmp.eq.s32.totalorder %s33, 1
      %p72 = scmp.ne.s32.totalorder %s67, %s69
      %p73 = scmp.eq.s32.totalorder %s33, 0
      %p74 = por %p72, %p73
      %p75 = scmp.ne.s32.totalorder %s67, %s69
      %p76 = scmp.eq.s32.totalorder %s38, 1
      %p77 = por %p75, %p76
      %p78 = scmp.ne.s32.totalorder %s69, %s70
      %p79 = scmp.eq.s32.totalorder %s38, 0
      %p80 = por %p78, %p79
      %p81 = scmp.ne.s32.totalorder %s69, %s70
      %p82 = scmp.eq.s32.totalorder %s39, 1
      %p83 = por %p81, %p82
      %p85 = scmp.ne.s32.totalorder %s70, %s84
      %p86 = scmp.eq.s32.totalorder %s39, 0
      %p87 = por %p85, %p86
      %s89 = sadd.s32 %s88, 1
      %p92 = scmp.eq.s32.totalorder %s33, 1
      %p93 = scmp.ne.s32.totalorder %s88, %s90
      %p94 = scmp.eq.s32.totalorder %s33, 0
      %p95 = por %p93, %p94
      %p96 = scmp.ne.s32.totalorder %s88, %s90
      %p97 = scmp.eq.s32.totalorder %s38, 1
      %p98 = por %p96, %p97
      %p99 = scmp.ne.s32.totalorder %s90, %s91
      %p100 = scmp.eq.s32.totalorder %s38, 0
      %p101 = por %p99, %p100
      %p102 = scmp.ne.s32.totalorder %s90, %s91
      %p103 = scmp.eq.s32.totalorder %s39, 1
      %p104 = por %p102, %p103
      %p106 = scmp.ne.s32.totalorder %s91, %s105
      %p107 = scmp.eq.s32.totalorder %s39, 0
      %p108 = por %p106, %p107
      %s110 = sadd.s32 %s109, 1
      %p113 = scmp.eq.s32.totalorder %s33, 1
      %p114 = scmp.ne.s32.totalorder %s109, %s111
      %p115 = scmp.eq.s32.totalorder %s33, 0
      %p116 = por %p114, %p115
      %p117 = scmp.ne.s32.totalorder %s109, %s111
      %p118 = scmp.eq.s32.totalorder %s38, 1
      %p119 = por %p117, %p118
      %p120 = scmp.ne.s32.totalorder %s111, %s112
      %p121 = scmp.eq.s32.totalorder %s38, 0
      %p122 = por %p120, %p121
      %p123 = scmp.ne.s32.totalorder %s111, %s112
      %p124 = scmp.eq.s32.totalorder %s39, 1
      %p125 = por %p123, %p124
      %p127 = scmp.ne.s32.totalorder %s112, %s126
      %p128 = scmp.eq.s32.totalorder %s39, 0
      %p129 = por %p127, %p128
      %s131 = sadd.s32 %s130, 1
      %p134 = scmp.eq.s32.totalorder %s33, 1
      %p135 = scmp.ne.s32.totalorder %s130, %s132
      %p136 = scmp.eq.s32.totalorder %s33, 0
      %p137 = por %p135, %p136
      %p138 = scmp.ne.s32.totalorder %s130, %s132
      %p139 = scmp.eq.s32.totalorder %s38, 1
      %p140 = por %p138, %p139
      %p141 = scmp.ne.s32.totalorder %s132, %s133
      %p142 = scmp.eq.s32.totalorder %s38, 0
      %p143 = por %p141, %p142
      %p144 = scmp.ne.s32.totalorder %s132, %s133
      %p145 = scmp.eq.s32.totalorder %s39, 1
      %p146 = por %p144, %p145
      %p148 = scmp.ne.s32.totalorder %s133, %s147
      %p149 = scmp.eq.s32.totalorder %s39, 0
      %p150 = por %p148, %p149
      %s152 = sadd.s32 %s151, 1
      %p155 = scmp.eq.s32.totalorder %s33, 1
      %p156 = scmp.ne.s32.totalorder %s151, %s153
      %p157 = scmp.eq.s32.totalorder %s33, 0
      %p158 = por %p156, %p157
      %p159 = scmp.ne.s32.totalorder %s151, %s153
      %p160 = scmp.eq.s32.totalorder %s38, 1
      %p161 = por %p159, %p160
      %p162 = scmp.ne.s32.totalorder %s153, %s154
      %p163 = scmp.eq.s32.totalorder %s38, 0
      %p164 = por %p162, %p163
      %p165 = scmp.ne.s32.totalorder %s153, %s154
      %p166 = scmp.eq.s32.totalorder %s39, 1
      %p167 = por %p165, %p166
      %p169 = scmp.ne.s32.totalorder %s154, %s168
      %p170 = scmp.eq.s32.totalorder %s39, 0
      %p171 = por %p169, %p170
      %s173 = sadd.s32 %s172, 1
      %p176 = scmp.eq.s32.totalorder %s33, 1
      %p177 = scmp.ne.s32.totalorder %s172, %s174
      %p178 = scmp.eq.s32.totalorder %s33, 0
      %p179 = por %p177, %p178
      %p180 = scmp.ne.s32.totalorder %s172, %s174
      %p181 = scmp.eq.s32.totalorder %s38, 1
      %p182 = por %p180, %p181
      %p183 = scmp.ne.s32.totalorder %s174, %s175
      %p184 = scmp.eq.s32.totalorder %s38, 0
      %p185 = por %p183, %p184
      %p186 = scmp.ne.s32.totalorder %s174, %s175
      %p187 = scmp.eq.s32.totalorder %s39, 1
      %p188 = por %p186, %p187
      %p190 = scmp.ne.s32.totalorder %s175, %s189
      %p191 = scmp.eq.s32.totalorder %s39, 0
      %p192 = por %p190, %p191
      %s194 = sadd.s32 %s193, 1
      %p197 = scmp.eq.s32.totalorder %s33, 1
      %p198 = scmp.ne.s32.totalorder %s193, %s195
      %p199 = scmp.eq.s32.totalorder %s33, 0
      %p200 = por %p198, %p199
      %p201 = scmp.ne.s32.totalorder %s193, %s195
      %p202 = scmp.eq.s32.totalorder %s38, 1
      %p203 = por %p201, %p202
      %p204 = scmp.ne.s32.totalorder %s195, %s196
      %p205 = scmp.eq.s32.totalorder %s38, 0
      %p206 = por %p204, %p205
      %p207 = scmp.ne.s32.totalorder %s195, %s196
      %p208 = scmp.eq.s32.totalorder %s39, 1
      %p209 = por %p207, %p208
      %p211 = scmp.ne.s32.totalorder %s196, %s210
      %p212 = scmp.eq.s32.totalorder %s39, 0
      %p213 = por %p211, %p212
      %s215 = sadd.s32 %s214, 1
      %p218 = scmp.eq.s32.totalorder %s33, 1
      %p219 = scmp.ne.s32.totalorder %s214, %s216
      %p220 = scmp.eq.s32.totalorder %s33, 0
      %p221 = por %p219, %p220
      %p222 = scmp.ne.s32.totalorder %s214, %s216
      %p223 = scmp.eq.s32.totalorder %s38, 1
      %p224 = por %p222, %p223
      %p225 = scmp.ne.s32.totalorder %s216, %s217
      %p226 = scmp.eq.s32.totalorder %s38, 0
      %p227 = por %p225, %p226
      %p228 = scmp.ne.s32.totalorder %s216, %s217
      %p229 = scmp.eq.s32.totalorder %s39, 1
      %p230 = por %p228, %p229
      %p232 = scmp.ne.s32.totalorder %s217, %s231
      %p233 = scmp.eq.s32.totalorder %s39, 0
      %p234 = por %p232, %p233
      %s236 = sadd.s32 %s235, 1
      %p239 = scmp.eq.s32.totalorder %s33, 1
      %p240 = scmp.ne.s32.totalorder %s235, %s237
      %p241 = scmp.eq.s32.totalorder %s33, 0
      %p242 = por %p240, %p241
      %p243 = scmp.ne.s32.totalorder %s235, %s237
      %p244 = scmp.eq.s32.totalorder %s38, 1
      %p245 = por %p243, %p244
      %p246 = scmp.ne.s32.totalorder %s237, %s238
      %p247 = scmp.eq.s32.totalorder %s38, 0
      %p248 = por %p246, %p247
      %p249 = scmp.ne.s32.totalorder %s237, %s238
      %p250 = scmp.eq.s32.totalorder %s39, 1
      %p251 = por %p249, %p250
      %p253 = scmp.ne.s32.totalorder %s238, %s252
      %p254 = scmp.eq.s32.totalorder %s39, 0
      %p255 = por %p253, %p254
      %s257 = sadd.s32 %s256, 1
      %p260 = scmp.eq.s32.totalorder %s33, 1
      %p261 = scmp.ne.s32.totalorder %s256, %s258
      %p262 = scmp.eq.s32.totalorder %s33, 0
      %p263 = por %p261, %p262
      %p264 = scmp.ne.s32.totalorder %s256, %s258
      %p265 = scmp.eq.s32.totalorder %s38, 1
      %p266 = por %p264, %p265
      %p267 = scmp.ne.s32.totalorder %s258, %s259
      %p268 = scmp.eq.s32.totalorder %s38, 0
      %p269 = por %p267, %p268
      %p270 = scmp.ne.s32.totalorder %s258, %s259
      %p271 = scmp.eq.s32.totalorder %s39, 1
      %p272 = por %p270, %p271
      %p274 = scmp.ne.s32.totalorder %s259, %s273
      %p275 = scmp.eq.s32.totalorder %s39, 0
      %p276 = por %p274, %p275
      %s278 = sadd.s32 %s277, 1
      %p281 = scmp.eq.s32.totalorder %s33, 1
      %p282 = scmp.ne.s32.totalorder %s277, %s279
      %p283 = scmp.eq.s32.totalorder %s33, 0
      %p284 = por %p282, %p283
      %p285 = scmp.ne.s32.totalorder %s277, %s279
      %p286 = scmp.eq.s32.totalorder %s38, 1
      %p287 = por %p285, %p286
      %p288 = scmp.ne.s32.totalorder %s279, %s280
      %p289 = scmp.eq.s32.totalorder %s38, 0
      %p290 = por %p288, %p289
      %p291 = scmp.ne.s32.totalorder %s279, %s280
      %p292 = scmp.eq.s32.totalorder %s39, 1
      %p293 = por %p291, %p292
      %p295 = scmp.ne.s32.totalorder %s280, %s294
      %p296 = scmp.eq.s32.totalorder %s39, 0
      %p297 = por %p295, %p296
      %s299 = sadd.s32 %s298, 1
      %p302 = scmp.eq.s32.totalorder %s33, 1
      %p303 = scmp.ne.s32.totalorder %s298, %s300
      %p304 = scmp.eq.s32.totalorder %s33, 0
      %p305 = por %p303, %p304
      %p306 = scmp.ne.s32.totalorder %s298, %s300
      %p307 = scmp.eq.s32.totalorder %s38, 1
      %p308 = por %p306, %p307
      %p309 = scmp.ne.s32.totalorder %s300, %s301
      %p310 = scmp.eq.s32.totalorder %s38, 0
      %p311 = por %p309, %p310
      %p312 = scmp.ne.s32.totalorder %s300, %s301
      %p313 = scmp.eq.s32.totalorder %s39, 1
      %p314 = por %p312, %p313
      %p316 = scmp.ne.s32.totalorder %s301, %s315
      %p317 = scmp.eq.s32.totalorder %s39, 0
      %p318 = por %p316, %p317
      %s320 = sadd.s32 %s319, 1
      %p323 = scmp.eq.s32.totalorder %s33, 1
      %p324 = scmp.ne.s32.totalorder %s319, %s321
      %p325 = scmp.eq.s32.totalorder %s33, 0
      %p326 = por %p324, %p325
      %p327 = scmp.ne.s32.totalorder %s319, %s321
      %p328 = scmp.eq.s32.totalorder %s38, 1
      %p329 = por %p327, %p328
      %p330 = scmp.ne.s32.totalorder %s321, %s322
      %p331 = scmp.eq.s32.totalorder %s38, 0
      %p332 = por %p330, %p331
      %p333 = scmp.ne.s32.totalorder %s321, %s322
      %p334 = scmp.eq.s32.totalorder %s39, 1
      %p335 = por %p333, %p334
      %p337 = scmp.ne.s32.totalorder %s322, %s336
      %p338 = scmp.eq.s32.totalorder %s39, 0
      %p339 = por %p337, %p338
      %s341 = sadd.s32 %s340, 1
      %p344 = scmp.eq.s32.totalorder %s33, 1
      %p345 = scmp.ne.s32.totalorder %s340, %s342
      %p346 = scmp.eq.s32.totalorder %s33, 0
      %p347 = por %p345, %p346
      %p348 = scmp.ne.s32.totalorder %s340, %s342
      %p349 = scmp.eq.s32.totalorder %s38, 1
      %p350 = por %p348, %p349
      %p351 = scmp.ne.s32.totalorder %s342, %s343
      %p352 = scmp.eq.s32.totalorder %s38, 0
      %p353 = por %p351, %p352
      %p354 = scmp.ne.s32.totalorder %s342, %s343
      %p355 = scmp.eq.s32.totalorder %s39, 1
      %p356 = por %p354, %p355
      %p358 = scmp.ne.s32.totalorder %s343, %s357
      %p359 = scmp.eq.s32.totalorder %s39, 0
      %p360 = por %p358, %p359
      %s362 = sadd.s32 %s361, 1
      %p365 = scmp.eq.s32.totalorder %s33, 1
      %p366 = scmp.ne.s32.totalorder %s361, %s363
      %p367 = scmp.eq.s32.totalorder %s33, 0
      %p368 = por %p366, %p367
      %p369 = scmp.ne.s32.totalorder %s361, %s363
      %p370 = scmp.eq.s32.totalorder %s38, 1
      %p371 = por %p369, %p370
      %p372 = scmp.ne.s32.totalorder %s363, %s364
      %p373 = scmp.eq.s32.totalorder %s38, 0
      %p374 = por %p372, %p373
      %p375 = scmp.ne.s32.totalorder %s363, %s364
      %p376 = scmp.eq.s32.totalorder %s39, 1
      %p377 = por %p375, %p376
      %p379 = scmp.ne.s32.totalorder %s364, %s378
      %p380 = scmp.eq.s32.totalorder %s39, 0
      %p381 = por %p379, %p380
      %s383 = sadd.s32 %s382, 1
      %p386 = scmp.eq.s32.totalorder %s33, 1
      %p387 = scmp.ne.s32.totalorder %s382, %s384
      %p388 = scmp.eq.s32.totalorder %s33, 0
      %p389 = por %p387, %p388
      %p390 = scmp.ne.s32.totalorder %s382, %s384
      %p391 = scmp.eq.s32.totalorder %s38, 1
      %p392 = por %p390, %p391
      %p393 = scmp.ne.s32.totalorder %s384, %s385
      %p394 = scmp.eq.s32.totalorder %s38, 0
      %p395 = por %p393, %p394
      %p396 = scmp.ne.s32.totalorder %s384, %s385
      %p397 = scmp.eq.s32.totalorder %s39, 1
      %p398 = por %p396, %p397
      %p400 = scmp.ne.s32.totalorder %s385, %s399
      %p401 = scmp.eq.s32.totalorder %s39, 0
      %p402 = por %p400, %p401
      %s403 = ssub.s32 %s33, %s40
      %p404 = scmp.eq.s32.totalorder %s403, 0
      %s406 = sadd.s32 %s405, 1
      %s407 = scalar_select %p404, %s405, %s406
      %p410 = pneg %p404
      %p411 = scmp.eq.s32.totalorder %s33, 1
      %p412 = por %p410, %p411
      %p413 = scmp.ne.s32.totalorder %s405, %s408
      %p414 = scmp.eq.s32.totalorder %s33, 0
      %p415 = por %p413, %p414
      %p416 = scmp.ne.s32.totalorder %s405, %s408
      %p417 = scmp.eq.s32.totalorder %s38, 1
      %p418 = por %p416, %p417
      %p419 = scmp.ne.s32.totalorder %s408, %s409
      %p420 = scmp.eq.s32.totalorder %s38, 0
      %p421 = por %p419, %p420
      %p422 = scmp.ne.s32.totalorder %s408, %s409
      %p423 = scmp.eq.s32.totalorder %s39, 1
      %p424 = por %p422, %p423
      %p426 = scmp.ne.s32.totalorder %s409, %s425
      %p427 = scmp.eq.s32.totalorder %s39, 0
      %p428 = por %p426, %p427
      %p429 = scmp.le.s32.totalorder 1, %s33
      %p430 = scmp.lt.s32.totalorder %s33, 3
      %p431 = pnand %p429, %p430
      %p432 = pneg %p431
      // Predicated region
      $region9: #{tpu_custom_call.1} parent=5 // pred_check
        _
      $region10: #{tpu_custom_call.1} parent=5 // pred_check_branch
        %434 = sbr.rel (%p431) target = $region12
      $region11: #{tpu_custom_call.1} parent=5 // pred_region
        %s435 = ssub.s32 %s33, 1
        // Predicated region
        $region13: #{tpu_custom_call.1} parent=11 // pred_check
          %p436 = pneg %p80
        $region14: #{tpu_custom_call.1} parent=11 // pred_check_branch
          %438 = sbr.rel (%p436) target = $region16
        $region15: #{tpu_custom_call.1} parent=11 // pred_region
          %s440 = ssub.s32 3072, 3072
          %441 = vsyncadd [#allocation7], %s440
          %s442 = sshll.u32 [#allocation6], 4
          %s443 = int_to_ptr.vmem [resolvable:$true] %s442
          %448 = dma.hbm_to_vmem [thread:$0]  %s1, 3072, %s443, [#allocation7], 64, 64, 4
        $region16: #{tpu_custom_call.1} parent=11 // pred_fallthru
          _
        // Predicated region
        $region17: #{tpu_custom_call.1} parent=11 // pred_check
          %p449 = pneg %p101
        $region18: #{tpu_custom_call.1} parent=11 // pred_check_branch
          %451 = sbr.rel (%p449) target = $region20
        $region19: #{tpu_custom_call.1} parent=11 // pred_region
          _
        $region20: #{tpu_custom_call.1} parent=11 // pred_fallthru
          _
        // Predicated region
        $region21: #{tpu_custom_call.1} parent=11 // pred_check
          %p452 = pneg %p122
        $region22: #{tpu_custom_call.1} parent=11 // pred_check_branch
          %454 = sbr.rel (%p452) target = $region24
        $region23: #{tpu_custom_call.1} parent=11 // pred_region
          %s456 = ssub.s32 3072, 3072
          %457 = vsyncadd [#allocation7], %s456
          %s458 = sshll.u32 [#allocation8], 4
          %s459 = int_to_ptr.vmem [resolvable:$true] %s458
          %464 = dma.hbm_to_vmem [thread:$0]  %s3, 3072, %s459, [#allocation7], 64, 64, 4
        $region24: #{tpu_custom_call.1} parent=11 // pred_fallthru
          _
        // Predicated region
        $region25: #{tpu_custom_call.1} parent=11 // pred_check
          %p465 = pneg %p143
        $region26: #{tpu_custom_call.1} parent=11 // pred_check_branch
          %467 = sbr.rel (%p465) target = $region28
        $region27: #{tpu_custom_call.1} parent=11 // pred_region
          _
        $region28: #{tpu_custom_call.1} parent=11 // pred_fallthru
          _
        // Predicated region
        $region29: #{tpu_custom_call.1} parent=11 // pred_check
          %p468 = pneg %p164
        $region30: #{tpu_custom_call.1} parent=11 // pred_check_branch
          %470 = sbr.rel (%p468) target = $region32
        $region31: #{tpu_custom_call.1} parent=11 // pred_region
          %s472 = ssub.s32 1024, 1024
          %473 = vsyncadd [#allocation10], %s472
          %s474 = sshll.u32 [#allocation9], 4
          %s475 = int_to_ptr.vmem [resolvable:$true] %s474
          %480 = dma.hbm_to_vmem [thread:$0]  %s5, 1024, %s475, [#allocation10], 64, 64, 4
        $region32: #{tpu_custom_call.1} parent=11 // pred_fallthru
          _
        // Predicated region
        $region33: #{tpu_custom_call.1} parent=11 // pred_check
          %p481 = pneg %p185
        $region34: #{tpu_custom_call.1} parent=11 // pred_check_branch
          %483 = sbr.rel (%p481) target = $region36
        $region35: #{tpu_custom_call.1} parent=11 // pred_region
          _
        $region36: #{tpu_custom_call.1} parent=11 // pred_fallthru
          _
        // Predicated region
        $region37: #{tpu_custom_call.1} parent=11 // pred_check
          %p484 = pneg %p206
        $region38: #{tpu_custom_call.1} parent=11 // pred_check_branch
          %486 = sbr.rel (%p484) target = $region40
        $region39: #{tpu_custom_call.1} parent=11 // pred_region
          %s488 = ssub.s32 3072, 3072
          %489 = vsyncadd [#allocation10], %s488
          %s490 = sshll.u32 [#allocation11], 4
          %s491 = int_to_ptr.vmem [resolvable:$true] %s490
          %496 = dma.hbm_to_vmem [thread:$0]  %s7, 3072, %s491, [#allocation10], 64, 64, 4
        $region40: #{tpu_custom_call.1} parent=11 // pred_fallthru
          _
        // Predicated region
        $region41: #{tpu_custom_call.1} parent=11 // pred_check
          %p497 = pneg %p227
        $region42: #{tpu_custom_call.1} parent=11 // pred_check_branch
          %499 = sbr.rel (%p497) target = $region44
        $region43: #{tpu_custom_call.1} parent=11 // pred_region
          _
        $region44: #{tpu_custom_call.1} parent=11 // pred_fallthru
          _
        // Predicated region
        $region45: #{tpu_custom_call.1} parent=11 // pred_check
          %p500 = pneg %p248
        $region46: #{tpu_custom_call.1} parent=11 // pred_check_branch
          %502 = sbr.rel (%p500) target = $region48
        $region47: #{tpu_custom_call.1} parent=11 // pred_region
          %s504 = ssub.s32 3072, 3072
          %505 = vsyncadd [#allocation13], %s504
          %s506 = sshll.u32 [#allocation12], 4
          %s507 = int_to_ptr.vmem [resolvable:$true] %s506
          %512 = dma.hbm_to_vmem [thread:$0]  %s9, 3072, %s507, [#allocation13], 64, 64, 4
        $region48: #{tpu_custom_call.1} parent=11 // pred_fallthru
          _
        // Predicated region
        $region49: #{tpu_custom_call.1} parent=11 // pred_check
          %p513 = pneg %p269
        $region50: #{tpu_custom_call.1} parent=11 // pred_check_branch
          %515 = sbr.rel (%p513) target = $region52
        $region51: #{tpu_custom_call.1} parent=11 // pred_region
          _
        $region52: #{tpu_custom_call.1} parent=11 // pred_fallthru
          _
        // Predicated region
        $region53: #{tpu_custom_call.1} parent=11 // pred_check
          %p516 = pneg %p290
        $region54: #{tpu_custom_call.1} parent=11 // pred_check_branch
          %518 = sbr.rel (%p516) target = $region56
        $region55: #{tpu_custom_call.1} parent=11 // pred_region
          %s520 = ssub.s32 3072, 3072
          %521 = vsyncadd [#allocation13], %s520
          %s522 = sshll.u32 [#allocation14], 4
          %s523 = int_to_ptr.vmem [resolvable:$true] %s522
          %528 = dma.hbm_to_vmem [thread:$0]  %s11, 3072, %s523, [#allocation13], 64, 64, 4
        $region56: #{tpu_custom_call.1} parent=11 // pred_fallthru
          _
        // Predicated region
        $region57: #{tpu_custom_call.1} parent=11 // pred_check
          %p529 = pneg %p311
        $region58: #{tpu_custom_call.1} parent=11 // pred_check_branch
          %531 = sbr.rel (%p529) target = $region60
        $region59: #{tpu_custom_call.1} parent=11 // pred_region
          _
        $region60: #{tpu_custom_call.1} parent=11 // pred_fallthru
          _
        // Predicated region
        $region61: #{tpu_custom_call.1} parent=11 // pred_check
          %p532 = pneg %p332
        $region62: #{tpu_custom_call.1} parent=11 // pred_check_branch
          %534 = sbr.rel (%p532) target = $region64
        $region63: #{tpu_custom_call.1} parent=11 // pred_region
          %s536 = ssub.s32 3072, 3072
          %537 = vsyncadd [#allocation16], %s536
          %s538 = sshll.u32 [#allocation15], 4
          %s539 = int_to_ptr.vmem [resolvable:$true] %s538
          %544 = dma.hbm_to_vmem [thread:$0]  %s13, 3072, %s539, [#allocation16], 64, 64, 4
        $region64: #{tpu_custom_call.1} parent=11 // pred_fallthru
          _
        // Predicated region
        $region65: #{tpu_custom_call.1} parent=11 // pred_check
          %p545 = pneg %p353
        $region66: #{tpu_custom_call.1} parent=11 // pred_check_branch
          %547 = sbr.rel (%p545) target = $region68
        $region67: #{tpu_custom_call.1} parent=11 // pred_region
          _
        $region68: #{tpu_custom_call.1} parent=11 // pred_fallthru
          _
        // Predicated region
        $region69: #{tpu_custom_call.1} parent=11 // pred_check
          %p548 = pneg %p374
        $region70: #{tpu_custom_call.1} parent=11 // pred_check_branch
          %550 = sbr.rel (%p548) target = $region72
        $region71: #{tpu_custom_call.1} parent=11 // pred_region
          %s552 = ssub.s32 1024, 1024
          %553 = vsyncadd [#allocation16], %s552
          %s554 = sshll.u32 [#allocation17], 4
          %s555 = int_to_ptr.vmem [resolvable:$true] %s554
          %560 = dma.hbm_to_vmem [thread:$0]  %s15, 1024, %s555, [#allocation16], 64, 64, 4
        $region72: #{tpu_custom_call.1} parent=11 // pred_fallthru
          _
        // Predicated region
        $region73: #{tpu_custom_call.1} parent=11 // pred_check
          %p561 = pneg %p395
        $region74: #{tpu_custom_call.1} parent=11 // pred_check_branch
          %563 = sbr.rel (%p561) target = $region76
        $region75: #{tpu_custom_call.1} parent=11 // pred_region
          _
        $region76: #{tpu_custom_call.1} parent=11 // pred_fallthru
          _
      $region12: #{tpu_custom_call.1} parent=5 // pred_fallthru
        _
      %p564 = scmp.lt.s32.totalorder %s33, 2
      // Predicated region
      $region77: #{tpu_custom_call.1} parent=5 // pred_check
        %p565 = pneg %p564
      $region78: #{tpu_custom_call.1} parent=5 // pred_check_branch
        %567 = sbr.rel (%p565) target = $region80
      $region79: #{tpu_custom_call.1} parent=5 // pred_region
        // Predicated region
        $region81: #{tpu_custom_call.1} parent=79 // pred_check
          %p568 = pneg %p53
        $region82: #{tpu_custom_call.1} parent=79 // pred_check_branch
          %570 = sbr.rel (%p568) target = $region84
        $region83: #{tpu_custom_call.1} parent=79 // pred_region
          %s571 = sand.u32 %s43, 1
          %s572 = scalar_lea.sflag [#allocation4], %s571
          %s573 = sand.u32 %s43, 1
          %s574 = smul.addr %s573, 16
          %s575 = scalar_lea.vmem [#allocation3], %s574
          %s577 = ssub.s32 256, 256
          %578 = vsyncadd %s572, %s577
          %s579 = smul.addr %s33, 2
          %s580 = smul.addr %s579, 128
          %s581 = scalar_lea.hbm %s0, %s580
          %s582 = sshll.u32 %s575, 4
          %s583 = int_to_ptr.vmem [resolvable:$true] %s582
          %588 = dma.hbm_to_vmem [thread:$0]  %s581, 256, %s583, %s572, 128, 128, 8
        $region84: #{tpu_custom_call.1} parent=79 // pred_fallthru
          _
      $region80: #{tpu_custom_call.1} parent=5 // pred_fallthru
        _
      %p589 = scmp.le.s32.totalorder 1, %s33
      %p590 = scmp.lt.s32.totalorder %s33, 3
      %p591 = pnand %p589, %p590
      %p592 = pneg %p591
      // Predicated region
      $region85: #{tpu_custom_call.1} parent=5 // pred_check
        _
      $region86: #{tpu_custom_call.1} parent=5 // pred_check_branch
        %594 = sbr.rel (%p591) target = $region88
      $region87: #{tpu_custom_call.1} parent=5 // pred_region
        %s595 = ssub.s32 %s33, 1
        %s596 = sand.u32 %s46, 1
        %s597 = scalar_lea.sflag [#allocation4], %s596
        %s598 = sand.u32 %s46, 1
        %s599 = smul.addr %s598, 16
        %s600 = scalar_lea.vmem [#allocation3], %s599
        // Predicated region
        $region89: #{tpu_custom_call.1} parent=87 // pred_check
          %p601 = pneg %p59
        $region90: #{tpu_custom_call.1} parent=87 // pred_check_branch
          %603 = sbr.rel (%p601) target = $region92
        $region91: #{tpu_custom_call.1} parent=87 // pred_region
          %604 = dma.done %s597, 256
        $region92: #{tpu_custom_call.1} parent=87 // pred_fallthru
          _
        // Predicated region
        $region93: #{tpu_custom_call.1} parent=87 // pred_check
          %p605 = pneg %p80
        $region94: #{tpu_custom_call.1} parent=87 // pred_check_branch
          %607 = sbr.rel (%p605) target = $region96
        $region95: #{tpu_custom_call.1} parent=87 // pred_region
          %608 = dma.done [#allocation7], 3072
        $region96: #{tpu_custom_call.1} parent=87 // pred_fallthru
          _
        // Predicated region
        $region97: #{tpu_custom_call.1} parent=87 // pred_check
          %p609 = pneg %p122
        $region98: #{tpu_custom_call.1} parent=87 // pred_check_branch
          %611 = sbr.rel (%p609) target = $region100
        $region99: #{tpu_custom_call.1} parent=87 // pred_region
          %612 = dma.done [#allocation7], 3072
        $region100: #{tpu_custom_call.1} parent=87 // pred_fallthru
          _
        // Predicated region
        $region101: #{tpu_custom_call.1} parent=87 // pred_check
          %p613 = pneg %p164
        $region102: #{tpu_custom_call.1} parent=87 // pred_check_branch
          %615 = sbr.rel (%p613) target = $region104
        $region103: #{tpu_custom_call.1} parent=87 // pred_region
          %616 = dma.done [#allocation10], 1024
        $region104: #{tpu_custom_call.1} parent=87 // pred_fallthru
          _
        // Predicated region
        $region105: #{tpu_custom_call.1} parent=87 // pred_check
          %p617 = pneg %p206
        $region106: #{tpu_custom_call.1} parent=87 // pred_check_branch
          %619 = sbr.rel (%p617) target = $region108
        $region107: #{tpu_custom_call.1} parent=87 // pred_region
          %620 = dma.done [#allocation10], 3072
        $region108: #{tpu_custom_call.1} parent=87 // pred_fallthru
          _
        // Predicated region
        $region109: #{tpu_custom_call.1} parent=87 // pred_check
          %p621 = pneg %p248
        $region110: #{tpu_custom_call.1} parent=87 // pred_check_branch
          %623 = sbr.rel (%p621) target = $region112
        $region111: #{tpu_custom_call.1} parent=87 // pred_region
          %624 = dma.done [#allocation13], 3072
        $region112: #{tpu_custom_call.1} parent=87 // pred_fallthru
          _
        // Predicated region
        $region113: #{tpu_custom_call.1} parent=87 // pred_check
          %p625 = pneg %p290
        $region114: #{tpu_custom_call.1} parent=87 // pred_check_branch
          %627 = sbr.rel (%p625) target = $region116
        $region115: #{tpu_custom_call.1} parent=87 // pred_region
          %628 = dma.done [#allocation13], 3072
        $region116: #{tpu_custom_call.1} parent=87 // pred_fallthru
          _
        // Predicated region
        $region117: #{tpu_custom_call.1} parent=87 // pred_check
          %p629 = pneg %p332
        $region118: #{tpu_custom_call.1} parent=87 // pred_check_branch
          %631 = sbr.rel (%p629) target = $region120
        $region119: #{tpu_custom_call.1} parent=87 // pred_region
          %632 = dma.done [#allocation16], 3072
        $region120: #{tpu_custom_call.1} parent=87 // pred_fallthru
          _
        // Predicated region
        $region121: #{tpu_custom_call.1} parent=87 // pred_check
          %p633 = pneg %p374
        $region122: #{tpu_custom_call.1} parent=87 // pred_check_branch
          %635 = sbr.rel (%p633) target = $region124
        $region123: #{tpu_custom_call.1} parent=87 // pred_region
          %636 = dma.done [#allocation16], 1024
        $region124: #{tpu_custom_call.1} parent=87 // pred_fallthru
          _
        %s637 = sand.u32 %s46, 1
        %s638 = scalar_lea.sflag [#allocation4], %s637
        %s639 = sand.u32 %s46, 1
        %s640 = smul.addr %s639, 16
        %s641 = scalar_lea.vmem [#allocation3], %s640
        %p642 = pneg %p59
        %p643 = pneg %p56
        %p644 = pneg %p80
        %p645 = pneg %p77
        %p646 = pneg %p101
        %p647 = pneg %p98
        %p648 = pneg %p122
        %p649 = pneg %p119
        %p650 = pneg %p143
        %p651 = pneg %p140
        %p652 = pneg %p164
        %p653 = pneg %p161
        %p654 = pneg %p185
        %p655 = pneg %p182
        %p656 = pneg %p206
        %p657 = pneg %p203
        %p658 = pneg %p227
        %p659 = pneg %p224
        %p660 = pneg %p248
        %p661 = pneg %p245
        %p662 = pneg %p269
        %p663 = pneg %p266
        %p664 = pneg %p290
        %p665 = pneg %p287
        %p666 = pneg %p311
        %p667 = pneg %p308
        %p668 = pneg %p332
        %p669 = pneg %p329
        %p670 = pneg %p353
        %p671 = pneg %p350
        %p672 = pneg %p374
        %p673 = pneg %p371
        %p674 = pneg %p395
        %p675 = pneg %p392
        %p676 = pneg %p421
        %p677 = pneg %p418
        %s678 = sand.u32 %s408, 1
        %s679 = scalar_lea.sflag [#allocation5], %s678
        %s680 = sand.u32 %s408, 1
        %s681 = smul.addr %s680, 16
        %s682 = scalar_lea.vmem [#allocation18], %s681
        %684 = vst [vmem:[#allocation2] sm:$0xff] 0.0
        %v685 = vld [vmem:[%s600] sm:$0xff]
        %v686 = vld [vmem:[%s600 + $0x8] sm:$0xff]
        %687 = vst [vmem:[#allocation2 + $0x8] sm:$0xff] %v685
        %688 = vst [vmem:[#allocation2 + $0x10] sm:$0xff] %v686
        %v689 = vld [vmem:[#allocation2 + $0x6] sm:$0xff]
        %v690 = vld [vmem:[#allocation2 + $0xe] sm:$0xff]
        %v691 = vld [vmem:[#allocation2 + $0x7] sm:$0xff]
        %v692 = vld [vmem:[#allocation2 + $0xf] sm:$0xff]
        %v693 = vld [vmem:[#allocation2 + $0x8] sm:$0xff]
        %v694 = vld [vmem:[#allocation2 + $0x10] sm:$0xff]
        %v695 = vpack.c.bf16 %v690, %v689
        %v696 = vpack.c.bf16 %v692, %v691
        %v697 = vpack.c.bf16 %v694, %v693
        %v698 = vld [vmem:[#allocation6] sm:$0xf]
        %v699 = vld [vmem:[#allocation6 + $0x4] sm:$0xf]
        %v700 = vld [vmem:[#allocation6 + $0x8] sm:$0xf]
        %v701 = vld [vmem:[#allocation6 + $0xc] sm:$0xf]
        %v702 = vld [vmem:[#allocation6 + $0x10] sm:$0xf]
        %v703 = vld [vmem:[#allocation6 + $0x14] sm:$0xf]
        %v704 = vld [vmem:[#allocation6 + $0x18] sm:$0xf]
        %v705 = vld [vmem:[#allocation6 + $0x1c] sm:$0xf]
        %v706 = vld [vmem:[#allocation6 + $0x20] sm:$0xf]
        %v707 = vld [vmem:[#allocation6 + $0x24] sm:$0xf]
        %v708 = vld [vmem:[#allocation6 + $0x28] sm:$0xf]
        %v709 = vld [vmem:[#allocation6 + $0x2c] sm:$0xf]
        %v710 = vld [vmem:[#allocation6 + $0x30] sm:$0xf]
        %v711 = vld [vmem:[#allocation6 + $0x34] sm:$0xf]
        %v712 = vld [vmem:[#allocation6 + $0x38] sm:$0xf]
        %v713 = vld [vmem:[#allocation6 + $0x3c] sm:$0xf]
        %v714 = vld [vmem:[#allocation6 + $0x40] sm:$0xf]
        %v715 = vld [vmem:[#allocation6 + $0x44] sm:$0xf]
        %v716 = vld [vmem:[#allocation6 + $0x48] sm:$0xf]
        %v717 = vld [vmem:[#allocation6 + $0x4c] sm:$0xf]
        %v718 = vld [vmem:[#allocation6 + $0x50] sm:$0xf]
        %v719 = vld [vmem:[#allocation6 + $0x54] sm:$0xf]
        %v720 = vld [vmem:[#allocation6 + $0x58] sm:$0xf]
        %v721 = vld [vmem:[#allocation6 + $0x5c] sm:$0xf]
        %v722 = vld [vmem:[#allocation6 + $0x60] sm:$0xf]
        %v723 = vld [vmem:[#allocation6 + $0x64] sm:$0xf]
        %v724 = vld [vmem:[#allocation6 + $0x68] sm:$0xf]
        %v725 = vld [vmem:[#allocation6 + $0x6c] sm:$0xf]
        %v726 = vld [vmem:[#allocation6 + $0x70] sm:$0xf]
        %v727 = vld [vmem:[#allocation6 + $0x74] sm:$0xf]
        %v728 = vld [vmem:[#allocation6 + $0x78] sm:$0xf]
        %v729 = vld [vmem:[#allocation6 + $0x7c] sm:$0xf]
        %v730 = vld [vmem:[#allocation6 + $0x80] sm:$0xf]
        %v731 = vld [vmem:[#allocation6 + $0x84] sm:$0xf]
        %v732 = vld [vmem:[#allocation6 + $0x88] sm:$0xf]
        %v733 = vld [vmem:[#allocation6 + $0x8c] sm:$0xf]
        %v734 = vld [vmem:[#allocation6 + $0x90] sm:$0xf]
        %v735 = vld [vmem:[#allocation6 + $0x94] sm:$0xf]
        %v736 = vld [vmem:[#allocation6 + $0x98] sm:$0xf]
        %v737 = vld [vmem:[#allocation6 + $0x9c] sm:$0xf]
        %v738 = vld [vmem:[#allocation6 + $0xa0] sm:$0xf]
        %v739 = vld [vmem:[#allocation6 + $0xa4] sm:$0xf]
        %v740 = vld [vmem:[#allocation6 + $0xa8] sm:$0xf]
        %v741 = vld [vmem:[#allocation6 + $0xac] sm:$0xf]
        %v742 = vld [vmem:[#allocation6 + $0xb0] sm:$0xf]
        %v743 = vld [vmem:[#allocation6 + $0xb4] sm:$0xf]
        %v744 = vld [vmem:[#allocation6 + $0xb8] sm:$0xf]
        %v745 = vld [vmem:[#allocation6 + $0xbc] sm:$0xf]
        %v746 = vld [vmem:[%s2] sm:$0x1]
        %v748 = vlaneseq
        %v749 = vshrl.u32 %v748, 7
        %v750 = vsub.s32 0, %v749
        %v751 = vrot.slane %v746, %v750
        %v801 = vunpack.c.l.b16 %v698
        %v802 = vunpack.c.l.b16 %v699
        %v803 = vunpack.c.l.b16 %v700
        %v804 = vunpack.c.l.b16 %v701
        %v805 = vunpack.c.l.b16 %v702
        %v806 = vunpack.c.l.b16 %v703
        %v807 = vunpack.c.l.b16 %v704
        %v808 = vunpack.c.l.b16 %v705
        %v809 = vunpack.c.l.b16 %v706
        %v810 = vunpack.c.l.b16 %v707
        %v811 = vunpack.c.l.b16 %v708
        %v812 = vunpack.c.l.b16 %v709
        %v813 = vunpack.c.l.b16 %v710
        %v814 = vunpack.c.l.b16 %v711
        %v815 = vunpack.c.l.b16 %v712
        %v816 = vunpack.c.l.b16 %v713
        %v817 = vunpack.c.l.b16 %v714
        %v818 = vunpack.c.l.b16 %v715
        %v819 = vunpack.c.l.b16 %v716
        %v820 = vunpack.c.l.b16 %v717
        %v821 = vunpack.c.l.b16 %v718
        %v822 = vunpack.c.l.b16 %v719
        %v823 = vunpack.c.l.b16 %v720
        %v824 = vunpack.c.l.b16 %v721
        %v825 = vunpack.c.l.b16 %v722
        %v826 = vunpack.c.l.b16 %v723
        %v827 = vunpack.c.l.b16 %v724
        %v828 = vunpack.c.l.b16 %v725
        %v829 = vunpack.c.l.b16 %v726
        %v830 = vunpack.c.l.b16 %v727
        %v831 = vunpack.c.l.b16 %v728
        %v832 = vunpack.c.l.b16 %v729
        %v833 = vunpack.c.l.b16 %v730
        %v834 = vunpack.c.l.b16 %v731
        %v835 = vunpack.c.l.b16 %v732
        %v836 = vunpack.c.l.b16 %v733
        %v837 = vunpack.c.l.b16 %v734
        %v838 = vunpack.c.l.b16 %v735
        %v839 = vunpack.c.l.b16 %v736
        %v840 = vunpack.c.l.b16 %v737
        %v841 = vunpack.c.l.b16 %v738
        %v842 = vunpack.c.l.b16 %v739
        %v843 = vunpack.c.l.b16 %v740
        %v844 = vunpack.c.l.b16 %v741
        %v845 = vunpack.c.l.b16 %v742
        %v846 = vunpack.c.l.b16 %v743
        %v847 = vunpack.c.l.b16 %v744
        %v848 = vunpack.c.l.b16 %v745
        %v849 = vpack.c.b16 %v802, %v801
        %v850 = vpack.c.b16 %v804, %v803
        %v851 = vpack.c.b16 %v806, %v805
        %v852 = vpack.c.b16 %v808, %v807
        %v853 = vpack.c.b16 %v810, %v809
        %v854 = vpack.c.b16 %v812, %v811
        %v855 = vpack.c.b16 %v814, %v813
        %v856 = vpack.c.b16 %v816, %v815
        %v857 = vpack.c.b16 %v818, %v817
        %v858 = vpack.c.b16 %v820, %v819
        %v859 = vpack.c.b16 %v822, %v821
        %v860 = vpack.c.b16 %v824, %v823
        %v861 = vpack.c.b16 %v826, %v825
        %v862 = vpack.c.b16 %v828, %v827
        %v863 = vpack.c.b16 %v830, %v829
        %v864 = vpack.c.b16 %v832, %v831
        %v865 = vpack.c.b16 %v834, %v833
        %v866 = vpack.c.b16 %v836, %v835
        %v867 = vpack.c.b16 %v838, %v837
        %v868 = vpack.c.b16 %v840, %v839
        %v869 = vpack.c.b16 %v842, %v841
        %v870 = vpack.c.b16 %v844, %v843
        %v871 = vpack.c.b16 %v846, %v845
        %v872 = vpack.c.b16 %v848, %v847
        %897 = vmatprep.subr.bf16.mxu0 0
        %898 = vmatpush1.bf16.msra.mxu0 %v856
        %899 = vmatprep.subr.bf16.mxu0 0
        %900 = vmatpush1.bf16.msra.mxu0 %v855
        %901 = vmatprep.subr.bf16.mxu0 0
        %902 = vmatpush1.bf16.msra.mxu0 %v854
        %903 = vmatprep.subr.bf16.mxu0 0
        %904 = vmatpush1.bf16.msra.mxu0 %v853
        %905 = vmatprep.subr.bf16.mxu0 0
        %906 = vmatpush1.bf16.msra.mxu0 %v852
        %907 = vmatprep.subr.bf16.mxu0 0
        %908 = vmatpush1.bf16.msra.mxu0 %v851
        %909 = vmatprep.subr.bf16.mxu0 0
        %910 = vmatpush1.bf16.msra.mxu0 %v850
        %911 = vmatprep.subr.bf16.mxu0 0
        %912 = vmatpush1.bf16.msra.mxu0 %v849
        %913 = vmatprep.subr.bf16.mxu0 0
        %914 = vmatpush2.bf16.msra.mxu0 %v864
        %915 = vmatprep.subr.bf16.mxu0 0
        %916 = vmatpush2.bf16.msra.mxu0 %v863
        %917 = vmatprep.subr.bf16.mxu0 0
        %918 = vmatpush2.bf16.msra.mxu0 %v862
        %919 = vmatprep.subr.bf16.mxu0 0
        %920 = vmatpush2.bf16.msra.mxu0 %v861
        %921 = vmatprep.subr.bf16.mxu0 0
        %922 = vmatpush2.bf16.msra.mxu0 %v860
        %923 = vmatprep.subr.bf16.mxu0 0
        %924 = vmatpush2.bf16.msra.mxu0 %v859
        %925 = vmatprep.subr.bf16.mxu0 0
        %926 = vmatpush2.bf16.msra.mxu0 %v858
        %927 = vmatprep.subr.bf16.mxu0 0
        %928 = vmatpush2.bf16.msra.mxu0 %v857
        %929 = vmatprep.mubr.bf16.mxu0 %v696
        %930 = vmatmul.mubr.bf16.gmra.mxu0 %v695
        %v931 = vpop.f32.mrf.mxu0
        %v932 = vadd.f32 %v751, %v931
        %v933 = vpop.f32.mrf.mxu0
        %v934 = vpop.f32.mrf.mxu0
        %v935 = vadd.f32 %v751, %v934
        %v936 = vpop.f32.mrf.mxu0
        %937 = vdwg.mxu0
        %938 = vmatprep.subr.bf16.mxu0 0
        %939 = vmatpush1.bf16.msra.mxu0 %v872
        %940 = vmatprep.subr.bf16.mxu0 0
        %941 = vmatpush1.bf16.msra.mxu0 %v871
        %942 = vmatprep.subr.bf16.mxu0 0
        %943 = vmatpush1.bf16.msra.mxu0 %v870
        %944 = vmatprep.subr.bf16.mxu0 0
        %945 = vmatpush1.bf16.msra.mxu0 %v869
        %946 = vmatprep.subr.bf16.mxu0 0
        %947 = vmatpush1.bf16.msra.mxu0 %v868
        %948 = vmatprep.subr.bf16.mxu0 0
        %949 = vmatpush1.bf16.msra.mxu0 %v867
        %950 = vmatprep.subr.bf16.mxu0 0
        %951 = vmatpush1.bf16.msra.mxu0 %v866
        %952 = vmatprep.subr.bf16.mxu0 0
        %953 = vmatpush1.bf16.msra.mxu0 %v865
        %954 = vmatprep.subr.bf16.mxu0 0
        %955 = vmatpush2.bf16.msra.mxu0 0
        %956 = vmatprep.subr.bf16.mxu0 0
        %957 = vmatpush2.bf16.msra.mxu0 0
        %958 = vmatprep.subr.bf16.mxu0 0
        %959 = vmatpush2.bf16.msra.mxu0 0
        %960 = vmatprep.subr.bf16.mxu0 0
        %961 = vmatpush2.bf16.msra.mxu0 0
        %962 = vmatprep.subr.bf16.mxu0 0
        %963 = vmatpush2.bf16.msra.mxu0 0
        %964 = vmatprep.subr.bf16.mxu0 0
        %965 = vmatpush2.bf16.msra.mxu0 0
        %966 = vmatprep.subr.bf16.mxu0 0
        %967 = vmatpush2.bf16.msra.mxu0 0
        %968 = vmatprep.subr.bf16.mxu0 0
        %969 = vmatpush2.bf16.msra.mxu0 0
        %970 = vmatprep.mubr.bf16.mxu0 0
        %971 = vmatmul.mubr.bf16.gmra.mxu0 %v697
        %v972 = vpop.f32.mrf.mxu0
        %v973 = vadd.f32 %v932, %v972
        %v974 = vpop.f32.mrf.mxu0
        %v975 = vpop.f32.mrf.mxu0
        %v976 = vadd.f32 %v935, %v975
        %v977 = vpop.f32.mrf.mxu0
        %978 = vdwg.mxu0
        %vm979 = vcmp.ge.f32.partialorder %v973, 0.0
        %vm980 = vcmp.ge.f32.partialorder %v976, 0.0
        %v981 = vmul.f32 %v973, 0.01
        %v982 = vmul.f32 %v976, 0.01
        %v983 = vsel %vm979, %v973, %v981
        %v984 = vsel %vm980, %v976, %v982
        %985 = vst [vmem:[#allocation2 + $0x8] sm:$0xff] %v983
        %986 = vst [vmem:[#allocation2 + $0x10] sm:$0xff] %v984
        %v987 = vld [vmem:[#allocation2 + $0x6] sm:$0xff]
        %v988 = vld [vmem:[#allocation2 + $0xe] sm:$0xff]
        %v989 = vld [vmem:[#allocation2 + $0x7] sm:$0xff]
        %v990 = vld [vmem:[#allocation2 + $0xf] sm:$0xff]
        %v991 = vld [vmem:[#allocation2 + $0x8] sm:$0xff]
        %v992 = vld [vmem:[#allocation2 + $0x10] sm:$0xff]
        %v993 = vpack.c.bf16 %v988, %v987
        %v994 = vpack.c.bf16 %v990, %v989
        %v995 = vpack.c.bf16 %v992, %v991
        %v996 = vld [vmem:[#allocation8] sm:$0xf]
        %v997 = vld [vmem:[#allocation8 + $0x4] sm:$0xf]
        %v998 = vld [vmem:[#allocation8 + $0x8] sm:$0xf]
        %v999 = vld [vmem:[#allocation8 + $0xc] sm:$0xf]
        %v1000 = vld [vmem:[#allocation8 + $0x10] sm:$0xf]
        %v1001 = vld [vmem:[#allocation8 + $0x14] sm:$0xf]
        %v1002 = vld [vmem:[#allocation8 + $0x18] sm:$0xf]
        %v1003 = vld [vmem:[#allocation8 + $0x1c] sm:$0xf]
        %v1004 = vld [vmem:[#allocation8 + $0x20] sm:$0xf]
        %v1005 = vld [vmem:[#allocation8 + $0x24] sm:$0xf]
        %v1006 = vld [vmem:[#allocation8 + $0x28] sm:$0xf]
        %v1007 = vld [vmem:[#allocation8 + $0x2c] sm:$0xf]
        %v1008 = vld [vmem:[#allocation8 + $0x30] sm:$0xf]
        %v1009 = vld [vmem:[#allocation8 + $0x34] sm:$0xf]
        %v1010 = vld [vmem:[#allocation8 + $0x38] sm:$0xf]
        %v1011 = vld [vmem:[#allocation8 + $0x3c] sm:$0xf]
        %v1012 = vld [vmem:[#allocation8 + $0x40] sm:$0xf]
        %v1013 = vld [vmem:[#allocation8 + $0x44] sm:$0xf]
        %v1014 = vld [vmem:[#allocation8 + $0x48] sm:$0xf]
        %v1015 = vld [vmem:[#allocation8 + $0x4c] sm:$0xf]
        %v1016 = vld [vmem:[#allocation8 + $0x50] sm:$0xf]
        %v1017 = vld [vmem:[#allocation8 + $0x54] sm:$0xf]
        %v1018 = vld [vmem:[#allocation8 + $0x58] sm:$0xf]
        %v1019 = vld [vmem:[#allocation8 + $0x5c] sm:$0xf]
        %v1020 = vld [vmem:[#allocation8 + $0x60] sm:$0xf]
        %v1021 = vld [vmem:[#allocation8 + $0x64] sm:$0xf]
        %v1022 = vld [vmem:[#allocation8 + $0x68] sm:$0xf]
        %v1023 = vld [vmem:[#allocation8 + $0x6c] sm:$0xf]
        %v1024 = vld [vmem:[#allocation8 + $0x70] sm:$0xf]
        %v1025 = vld [vmem:[#allocation8 + $0x74] sm:$0xf]
        %v1026 = vld [vmem:[#allocation8 + $0x78] sm:$0xf]
        %v1027 = vld [vmem:[#allocation8 + $0x7c] sm:$0xf]
        %v1028 = vld [vmem:[#allocation8 + $0x80] sm:$0xf]
        %v1029 = vld [vmem:[#allocation8 + $0x84] sm:$0xf]
        %v1030 = vld [vmem:[#allocation8 + $0x88] sm:$0xf]
        %v1031 = vld [vmem:[#allocation8 + $0x8c] sm:$0xf]
        %v1032 = vld [vmem:[#allocation8 + $0x90] sm:$0xf]
        %v1033 = vld [vmem:[#allocation8 + $0x94] sm:$0xf]
        %v1034 = vld [vmem:[#allocation8 + $0x98] sm:$0xf]
        %v1035 = vld [vmem:[#allocation8 + $0x9c] sm:$0xf]
        %v1036 = vld [vmem:[#allocation8 + $0xa0] sm:$0xf]
        %v1037 = vld [vmem:[#allocation8 + $0xa4] sm:$0xf]
        %v1038 = vld [vmem:[#allocation8 + $0xa8] sm:$0xf]
        %v1039 = vld [vmem:[#allocation8 + $0xac] sm:$0xf]
        %v1040 = vld [vmem:[#allocation8 + $0xb0] sm:$0xf]
        %v1041 = vld [vmem:[#allocation8 + $0xb4] sm:$0xf]
        %v1042 = vld [vmem:[#allocation8 + $0xb8] sm:$0xf]
        %v1043 = vld [vmem:[#allocation8 + $0xbc] sm:$0xf]
        %v1044 = vld [vmem:[%s4] sm:$0x1]
        %v1046 = vlaneseq
        %v1047 = vshrl.u32 %v1046, 7
        %v1048 = vsub.s32 0, %v1047
        %v1049 = vrot.slane %v1044, %v1048
        %v1099 = vunpack.c.l.b16 %v996
        %v1100 = vunpack.c.l.b16 %v997
        %v1101 = vunpack.c.l.b16 %v998
        %v1102 = vunpack.c.l.b16 %v999
        %v1103 = vunpack.c.l.b16 %v1000
        %v1104 = vunpack.c.l.b16 %v1001
        %v1105 = vunpack.c.l.b16 %v1002
        %v1106 = vunpack.c.l.b16 %v1003
        %v1107 = vunpack.c.l.b16 %v1004
        %v1108 = vunpack.c.l.b16 %v1005
        %v1109 = vunpack.c.l.b16 %v1006
        %v1110 = vunpack.c.l.b16 %v1007
        %v1111 = vunpack.c.l.b16 %v1008
        %v1112 = vunpack.c.l.b16 %v1009
        %v1113 = vunpack.c.l.b16 %v1010
        %v1114 = vunpack.c.l.b16 %v1011
        %v1115 = vunpack.c.l.b16 %v1012
        %v1116 = vunpack.c.l.b16 %v1013
        %v1117 = vunpack.c.l.b16 %v1014
        %v1118 = vunpack.c.l.b16 %v1015
        %v1119 = vunpack.c.l.b16 %v1016
        %v1120 = vunpack.c.l.b16 %v1017
        %v1121 = vunpack.c.l.b16 %v1018
        %v1122 = vunpack.c.l.b16 %v1019
        %v1123 = vunpack.c.l.b16 %v1020
        %v1124 = vunpack.c.l.b16 %v1021
        %v1125 = vunpack.c.l.b16 %v1022
        %v1126 = vunpack.c.l.b16 %v1023
        %v1127 = vunpack.c.l.b16 %v1024
        %v1128 = vunpack.c.l.b16 %v1025
        %v1129 = vunpack.c.l.b16 %v1026
        %v1130 = vunpack.c.l.b16 %v1027
        %v1131 = vunpack.c.l.b16 %v1028
        %v1132 = vunpack.c.l.b16 %v1029
        %v1133 = vunpack.c.l.b16 %v1030
        %v1134 = vunpack.c.l.b16 %v1031
        %v1135 = vunpack.c.l.b16 %v1032
        %v1136 = vunpack.c.l.b16 %v1033
        %v1137 = vunpack.c.l.b16 %v1034
        %v1138 = vunpack.c.l.b16 %v1035
        %v1139 = vunpack.c.l.b16 %v1036
        %v1140 = vunpack.c.l.b16 %v1037
        %v1141 = vunpack.c.l.b16 %v1038
        %v1142 = vunpack.c.l.b16 %v1039
        %v1143 = vunpack.c.l.b16 %v1040
        %v1144 = vunpack.c.l.b16 %v1041
        %v1145 = vunpack.c.l.b16 %v1042
        %v1146 = vunpack.c.l.b16 %v1043
        %v1147 = vpack.c.b16 %v1100, %v1099
        %v1148 = vpack.c.b16 %v1102, %v1101
        %v1149 = vpack.c.b16 %v1104, %v1103
        %v1150 = vpack.c.b16 %v1106, %v1105
        %v1151 = vpack.c.b16 %v1108, %v1107
        %v1152 = vpack.c.b16 %v1110, %v1109
        %v1153 = vpack.c.b16 %v1112, %v1111
        %v1154 = vpack.c.b16 %v1114, %v1113
        %v1155 = vpack.c.b16 %v1116, %v1115
        %v1156 = vpack.c.b16 %v1118, %v1117
        %v1157 = vpack.c.b16 %v1120, %v1119
        %v1158 = vpack.c.b16 %v1122, %v1121
        %v1159 = vpack.c.b16 %v1124, %v1123
        %v1160 = vpack.c.b16 %v1126, %v1125
        %v1161 = vpack.c.b16 %v1128, %v1127
        %v1162 = vpack.c.b16 %v1130, %v1129
        %v1163 = vpack.c.b16 %v1132, %v1131
        %v1164 = vpack.c.b16 %v1134, %v1133
        %v1165 = vpack.c.b16 %v1136, %v1135
        %v1166 = vpack.c.b16 %v1138, %v1137
        %v1167 = vpack.c.b16 %v1140, %v1139
        %v1168 = vpack.c.b16 %v1142, %v1141
        %v1169 = vpack.c.b16 %v1144, %v1143
        %v1170 = vpack.c.b16 %v1146, %v1145
        %1195 = vmatprep.subr.bf16.mxu0 0
        %1196 = vmatpush1.bf16.msra.mxu0 %v1154
        %1197 = vmatprep.subr.bf16.mxu0 0
        %1198 = vmatpush1.bf16.msra.mxu0 %v1153
        %1199 = vmatprep.subr.bf16.mxu0 0
        %1200 = vmatpush1.bf16.msra.mxu0 %v1152
        %1201 = vmatprep.subr.bf16.mxu0 0
        %1202 = vmatpush1.bf16.msra.mxu0 %v1151
        %1203 = vmatprep.subr.bf16.mxu0 0
        %1204 = vmatpush1.bf16.msra.mxu0 %v1150
        %1205 = vmatprep.subr.bf16.mxu0 0
        %1206 = vmatpush1.bf16.msra.mxu0 %v1149
        %1207 = vmatprep.subr.bf16.mxu0 0
        %1208 = vmatpush1.bf16.msra.mxu0 %v1148
        %1209 = vmatprep.subr.bf16.mxu0 0
        %1210 = vmatpush1.bf16.msra.mxu0 %v1147
        %1211 = vmatprep.subr.bf16.mxu0 0
        %1212 = vmatpush2.bf16.msra.mxu0 %v1162
        %1213 = vmatprep.subr.bf16.mxu0 0
        %1214 = vmatpush2.bf16.msra.mxu0 %v1161
        %1215 = vmatprep.subr.bf16.mxu0 0
        %1216 = vmatpush2.bf16.msra.mxu0 %v1160
        %1217 = vmatprep.subr.bf16.mxu0 0
        %1218 = vmatpush2.bf16.msra.mxu0 %v1159
        %1219 = vmatprep.subr.bf16.mxu0 0
        %1220 = vmatpush2.bf16.msra.mxu0 %v1158
        %1221 = vmatprep.subr.bf16.mxu0 0
        %1222 = vmatpush2.bf16.msra.mxu0 %v1157
        %1223 = vmatprep.subr.bf16.mxu0 0
        %1224 = vmatpush2.bf16.msra.mxu0 %v1156
        %1225 = vmatprep.subr.bf16.mxu0 0
        %1226 = vmatpush2.bf16.msra.mxu0 %v1155
        %1227 = vmatprep.mubr.bf16.mxu0 %v994
        %1228 = vmatmul.mubr.bf16.gmra.mxu0 %v993
        %v1229 = vpop.f32.mrf.mxu0
        %v1230 = vadd.f32 %v1049, %v1229
        %v1231 = vpop.f32.mrf.mxu0
        %v1232 = vpop.f32.mrf.mxu0
        %v1233 = vadd.f32 %v1049, %v1232
        %v1234 = vpop.f32.mrf.mxu0
        %1235 = vdwg.mxu0
        %1236 = vmatprep.subr.bf16.mxu0 0
        %1237 = vmatpush1.bf16.msra.mxu0 %v1170
        %1238 = vmatprep.subr.bf16.mxu0 0
        %1239 = vmatpush1.bf16.msra.mxu0 %v1169
        %1240 = vmatprep.subr.bf16.mxu0 0
        %1241 = vmatpush1.bf16.msra.mxu0 %v1168
        %1242 = vmatprep.subr.bf16.mxu0 0
        %1243 = vmatpush1.bf16.msra.mxu0 %v1167
        %1244 = vmatprep.subr.bf16.mxu0 0
        %1245 = vmatpush1.bf16.msra.mxu0 %v1166
        %1246 = vmatprep.subr.bf16.mxu0 0
        %1247 = vmatpush1.bf16.msra.mxu0 %v1165
        %1248 = vmatprep.subr.bf16.mxu0 0
        %1249 = vmatpush1.bf16.msra.mxu0 %v1164
        %1250 = vmatprep.subr.bf16.mxu0 0
        %1251 = vmatpush1.bf16.msra.mxu0 %v1163
        %1252 = vmatprep.subr.bf16.mxu0 0
        %1253 = vmatpush2.bf16.msra.mxu0 0
        %1254 = vmatprep.subr.bf16.mxu0 0
        %1255 = vmatpush2.bf16.msra.mxu0 0
        %1256 = vmatprep.subr.bf16.mxu0 0
        %1257 = vmatpush2.bf16.msra.mxu0 0
        %1258 = vmatprep.subr.bf16.mxu0 0
        %1259 = vmatpush2.bf16.msra.mxu0 0
        %1260 = vmatprep.subr.bf16.mxu0 0
        %1261 = vmatpush2.bf16.msra.mxu0 0
        %1262 = vmatprep.subr.bf16.mxu0 0
        %1263 = vmatpush2.bf16.msra.mxu0 0
        %1264 = vmatprep.subr.bf16.mxu0 0
        %1265 = vmatpush2.bf16.msra.mxu0 0
        %1266 = vmatprep.subr.bf16.mxu0 0
        %1267 = vmatpush2.bf16.msra.mxu0 0
        %1268 = vmatprep.mubr.bf16.mxu0 0
        %1269 = vmatmul.mubr.bf16.gmra.mxu0 %v995
        %v1270 = vpop.f32.mrf.mxu0
        %v1271 = vadd.f32 %v1230, %v1270
        %v1272 = vpop.f32.mrf.mxu0
        %v1273 = vpop.f32.mrf.mxu0
        %v1274 = vadd.f32 %v1233, %v1273
        %v1275 = vpop.f32.mrf.mxu0
        %1276 = vdwg.mxu0
        %vm1277 = vcmp.ge.f32.partialorder %v1271, 0.0
        %vm1278 = vcmp.ge.f32.partialorder %v1274, 0.0
        %v1279 = vmul.f32 %v1271, 0.01
        %v1280 = vmul.f32 %v1274, 0.01
        %v1281 = vsel %vm1277, %v1271, %v1279
        %v1282 = vsel %vm1278, %v1274, %v1280
        %v1283 = vpack.c.bf16 %v686, %v685
        %v1284 = vld [vmem:[#allocation9] sm:$0xf]
        %v1285 = vld [vmem:[#allocation9 + $0x4] sm:$0xf]
        %v1286 = vld [vmem:[#allocation9 + $0x8] sm:$0xf]
        %v1287 = vld [vmem:[#allocation9 + $0xc] sm:$0xf]
        %v1288 = vld [vmem:[#allocation9 + $0x10] sm:$0xf]
        %v1289 = vld [vmem:[#allocation9 + $0x14] sm:$0xf]
        %v1290 = vld [vmem:[#allocation9 + $0x18] sm:$0xf]
        %v1291 = vld [vmem:[#allocation9 + $0x1c] sm:$0xf]
        %v1292 = vld [vmem:[#allocation9 + $0x20] sm:$0xf]
        %v1293 = vld [vmem:[#allocation9 + $0x24] sm:$0xf]
        %v1294 = vld [vmem:[#allocation9 + $0x28] sm:$0xf]
        %v1295 = vld [vmem:[#allocation9 + $0x2c] sm:$0xf]
        %v1296 = vld [vmem:[#allocation9 + $0x30] sm:$0xf]
        %v1297 = vld [vmem:[#allocation9 + $0x34] sm:$0xf]
        %v1298 = vld [vmem:[#allocation9 + $0x38] sm:$0xf]
        %v1299 = vld [vmem:[#allocation9 + $0x3c] sm:$0xf]
        %v1300 = vld [vmem:[%s6] sm:$0x1]
        %v1302 = vlaneseq
        %v1303 = vshrl.u32 %v1302, 7
        %v1304 = vsub.s32 0, %v1303
        %v1305 = vrot.slane %v1300, %v1304
        %v1323 = vunpack.c.l.b16 %v1284
        %v1324 = vunpack.c.l.b16 %v1285
        %v1325 = vunpack.c.l.b16 %v1286
        %v1326 = vunpack.c.l.b16 %v1287
        %v1327 = vunpack.c.l.b16 %v1288
        %v1328 = vunpack.c.l.b16 %v1289
        %v1329 = vunpack.c.l.b16 %v1290
        %v1330 = vunpack.c.l.b16 %v1291
        %v1331 = vunpack.c.l.b16 %v1292
        %v1332 = vunpack.c.l.b16 %v1293
        %v1333 = vunpack.c.l.b16 %v1294
        %v1334 = vunpack.c.l.b16 %v1295
        %v1335 = vunpack.c.l.b16 %v1296
        %v1336 = vunpack.c.l.b16 %v1297
        %v1337 = vunpack.c.l.b16 %v1298
        %v1338 = vunpack.c.l.b16 %v1299
        %v1339 = vpack.c.b16 %v1324, %v1323
        %v1340 = vpack.c.b16 %v1326, %v1325
        %v1341 = vpack.c.b16 %v1328, %v1327
        %v1342 = vpack.c.b16 %v1330, %v1329
        %v1343 = vpack.c.b16 %v1332, %v1331
        %v1344 = vpack.c.b16 %v1334, %v1333
        %v1345 = vpack.c.b16 %v1336, %v1335
        %v1346 = vpack.c.b16 %v1338, %v1337
        %1355 = vmatprep.subr.bf16.mxu0 0
        %1356 = vmatpush1.bf16.msra.mxu0 %v1346
        %1357 = vmatprep.subr.bf16.mxu0 0
        %1358 = vmatpush1.bf16.msra.mxu0 %v1345
        %1359 = vmatprep.subr.bf16.mxu0 0
        %1360 = vmatpush1.bf16.msra.mxu0 %v1344
        %1361 = vmatprep.subr.bf16.mxu0 0
        %1362 = vmatpush1.bf16.msra.mxu0 %v1343
        %1363 = vmatprep.subr.bf16.mxu0 0
        %1364 = vmatpush1.bf16.msra.mxu0 %v1342
        %1365 = vmatprep.subr.bf16.mxu0 0
        %1366 = vmatpush1.bf16.msra.mxu0 %v1341
        %1367 = vmatprep.subr.bf16.mxu0 0
        %1368 = vmatpush1.bf16.msra.mxu0 %v1340
        %1369 = vmatprep.subr.bf16.mxu0 0
        %1370 = vmatpush1.bf16.msra.mxu0 %v1339
        %1371 = vmatprep.subr.bf16.mxu0 0
        %1372 = vmatpush2.bf16.msra.mxu0 0
        %1373 = vmatprep.subr.bf16.mxu0 0
        %1374 = vmatpush2.bf16.msra.mxu0 0
        %1375 = vmatprep.subr.bf16.mxu0 0
        %1376 = vmatpush2.bf16.msra.mxu0 0
        %1377 = vmatprep.subr.bf16.mxu0 0
        %1378 = vmatpush2.bf16.msra.mxu0 0
        %1379 = vmatprep.subr.bf16.mxu0 0
        %1380 = vmatpush2.bf16.msra.mxu0 0
        %1381 = vmatprep.subr.bf16.mxu0 0
        %1382 = vmatpush2.bf16.msra.mxu0 0
        %1383 = vmatprep.subr.bf16.mxu0 0
        %1384 = vmatpush2.bf16.msra.mxu0 0
        %1385 = vmatprep.subr.bf16.mxu0 0
        %1386 = vmatpush2.bf16.msra.mxu0 0
        %1387 = vmatprep.mubr.bf16.mxu0 0
        %1388 = vmatmul.mubr.bf16.gmra.mxu0 %v1283
        %v1389 = vpop.f32.mrf.mxu0
        %v1390 = vadd.f32 %v1305, %v1389
        %v1391 = vpop.f32.mrf.mxu0
        %v1392 = vpop.f32.mrf.mxu0
        %v1393 = vadd.f32 %v1305, %v1392
        %v1394 = vpop.f32.mrf.mxu0
        %1395 = vdwg.mxu0
        %v1396 = vadd.f32 %v1281, %v1390
        %v1397 = vadd.f32 %v1282, %v1393
        %1398 = vst [vmem:[#allocation2 + $0x8] sm:$0xff] %v1396
        %1399 = vst [vmem:[#allocation2 + $0x10] sm:$0xff] %v1397
        %v1400 = vld [vmem:[#allocation2 + $0x4] sm:$0xff]
        %v1401 = vld [vmem:[#allocation2 + $0xc] sm:$0xff]
        %v1402 = vld [vmem:[#allocation2 + $0x6] sm:$0xff]
        %v1403 = vld [vmem:[#allocation2 + $0xe] sm:$0xff]
        %v1404 = vld [vmem:[#allocation2 + $0x8] sm:$0xff]
        %v1405 = vld [vmem:[#allocation2 + $0x10] sm:$0xff]
        %v1406 = vpack.c.bf16 %v1401, %v1400
        %v1407 = vpack.c.bf16 %v1403, %v1402
        %v1408 = vpack.c.bf16 %v1405, %v1404
        %v1409 = vld [vmem:[#allocation11] sm:$0xf]
        %v1410 = vld [vmem:[#allocation11 + $0x4] sm:$0xf]
        %v1411 = vld [vmem:[#allocation11 + $0x8] sm:$0xf]
        %v1412 = vld [vmem:[#allocation11 + $0xc] sm:$0xf]
        %v1413 = vld [vmem:[#allocation11 + $0x10] sm:$0xf]
        %v1414 = vld [vmem:[#allocation11 + $0x14] sm:$0xf]
        %v1415 = vld [vmem:[#allocation11 + $0x18] sm:$0xf]
        %v1416 = vld [vmem:[#allocation11 + $0x1c] sm:$0xf]
        %v1417 = vld [vmem:[#allocation11 + $0x20] sm:$0xf]
        %v1418 = vld [vmem:[#allocation11 + $0x24] sm:$0xf]
        %v1419 = vld [vmem:[#allocation11 + $0x28] sm:$0xf]
        %v1420 = vld [vmem:[#allocation11 + $0x2c] sm:$0xf]
        %v1421 = vld [vmem:[#allocation11 + $0x30] sm:$0xf]
        %v1422 = vld [vmem:[#allocation11 + $0x34] sm:$0xf]
        %v1423 = vld [vmem:[#allocation11 + $0x38] sm:$0xf]
        %v1424 = vld [vmem:[#allocation11 + $0x3c] sm:$0xf]
        %v1425 = vld [vmem:[#allocation11 + $0x40] sm:$0xf]
        %v1426 = vld [vmem:[#allocation11 + $0x44] sm:$0xf]
        %v1427 = vld [vmem:[#allocation11 + $0x48] sm:$0xf]
        %v1428 = vld [vmem:[#allocation11 + $0x4c] sm:$0xf]
        %v1429 = vld [vmem:[#allocation11 + $0x50] sm:$0xf]
        %v1430 = vld [vmem:[#allocation11 + $0x54] sm:$0xf]
        %v1431 = vld [vmem:[#allocation11 + $0x58] sm:$0xf]
        %v1432 = vld [vmem:[#allocation11 + $0x5c] sm:$0xf]
        %v1433 = vld [vmem:[#allocation11 + $0x60] sm:$0xf]
        %v1434 = vld [vmem:[#allocation11 + $0x64] sm:$0xf]
        %v1435 = vld [vmem:[#allocation11 + $0x68] sm:$0xf]
        %v1436 = vld [vmem:[#allocation11 + $0x6c] sm:$0xf]
        %v1437 = vld [vmem:[#allocation11 + $0x70] sm:$0xf]
        %v1438 = vld [vmem:[#allocation11 + $0x74] sm:$0xf]
        %v1439 = vld [vmem:[#allocation11 + $0x78] sm:$0xf]
        %v1440 = vld [vmem:[#allocation11 + $0x7c] sm:$0xf]
        %v1441 = vld [vmem:[#allocation11 + $0x80] sm:$0xf]
        %v1442 = vld [vmem:[#allocation11 + $0x84] sm:$0xf]
        %v1443 = vld [vmem:[#allocation11 + $0x88] sm:$0xf]
        %v1444 = vld [vmem:[#allocation11 + $0x8c] sm:$0xf]
        %v1445 = vld [vmem:[#allocation11 + $0x90] sm:$0xf]
        %v1446 = vld [vmem:[#allocation11 + $0x94] sm:$0xf]
        %v1447 = vld [vmem:[#allocation11 + $0x98] sm:$0xf]
        %v1448 = vld [vmem:[#allocation11 + $0x9c] sm:$0xf]
        %v1449 = vld [vmem:[#allocation11 + $0xa0] sm:$0xf]
        %v1450 = vld [vmem:[#allocation11 + $0xa4] sm:$0xf]
        %v1451 = vld [vmem:[#allocation11 + $0xa8] sm:$0xf]
        %v1452 = vld [vmem:[#allocation11 + $0xac] sm:$0xf]
        %v1453 = vld [vmem:[#allocation11 + $0xb0] sm:$0xf]
        %v1454 = vld [vmem:[#allocation11 + $0xb4] sm:$0xf]
        %v1455 = vld [vmem:[#allocation11 + $0xb8] sm:$0xf]
        %v1456 = vld [vmem:[#allocation11 + $0xbc] sm:$0xf]
        %v1457 = vld [vmem:[%s8] sm:$0x1]
        %v1459 = vlaneseq
        %v1460 = vshrl.u32 %v1459, 7
        %v1461 = vsub.s32 0, %v1460
        %v1462 = vrot.slane %v1457, %v1461
        %v1512 = vunpack.c.l.b16 %v1409
        %v1513 = vunpack.c.l.b16 %v1410
        %v1514 = vunpack.c.l.b16 %v1411
        %v1515 = vunpack.c.l.b16 %v1412
        %v1516 = vunpack.c.l.b16 %v1413
        %v1517 = vunpack.c.l.b16 %v1414
        %v1518 = vunpack.c.l.b16 %v1415
        %v1519 = vunpack.c.l.b16 %v1416
        %v1520 = vunpack.c.l.b16 %v1417
        %v1521 = vunpack.c.l.b16 %v1418
        %v1522 = vunpack.c.l.b16 %v1419
        %v1523 = vunpack.c.l.b16 %v1420
        %v1524 = vunpack.c.l.b16 %v1421
        %v1525 = vunpack.c.l.b16 %v1422
        %v1526 = vunpack.c.l.b16 %v1423
        %v1527 = vunpack.c.l.b16 %v1424
        %v1528 = vunpack.c.l.b16 %v1425
        %v1529 = vunpack.c.l.b16 %v1426
        %v1530 = vunpack.c.l.b16 %v1427
        %v1531 = vunpack.c.l.b16 %v1428
        %v1532 = vunpack.c.l.b16 %v1429
        %v1533 = vunpack.c.l.b16 %v1430
        %v1534 = vunpack.c.l.b16 %v1431
        %v1535 = vunpack.c.l.b16 %v1432
        %v1536 = vunpack.c.l.b16 %v1433
        %v1537 = vunpack.c.l.b16 %v1434
        %v1538 = vunpack.c.l.b16 %v1435
        %v1539 = vunpack.c.l.b16 %v1436
        %v1540 = vunpack.c.l.b16 %v1437
        %v1541 = vunpack.c.l.b16 %v1438
        %v1542 = vunpack.c.l.b16 %v1439
        %v1543 = vunpack.c.l.b16 %v1440
        %v1544 = vunpack.c.l.b16 %v1441
        %v1545 = vunpack.c.l.b16 %v1442
        %v1546 = vunpack.c.l.b16 %v1443
        %v1547 = vunpack.c.l.b16 %v1444
        %v1548 = vunpack.c.l.b16 %v1445
        %v1549 = vunpack.c.l.b16 %v1446
        %v1550 = vunpack.c.l.b16 %v1447
        %v1551 = vunpack.c.l.b16 %v1448
        %v1552 = vunpack.c.l.b16 %v1449
        %v1553 = vunpack.c.l.b16 %v1450
        %v1554 = vunpack.c.l.b16 %v1451
        %v1555 = vunpack.c.l.b16 %v1452
        %v1556 = vunpack.c.l.b16 %v1453
        %v1557 = vunpack.c.l.b16 %v1454
        %v1558 = vunpack.c.l.b16 %v1455
        %v1559 = vunpack.c.l.b16 %v1456
        %v1560 = vpack.c.b16 %v1513, %v1512
        %v1561 = vpack.c.b16 %v1515, %v1514
        %v1562 = vpack.c.b16 %v1517, %v1516
        %v1563 = vpack.c.b16 %v1519, %v1518
        %v1564 = vpack.c.b16 %v1521, %v1520
        %v1565 = vpack.c.b16 %v1523, %v1522
        %v1566 = vpack.c.b16 %v1525, %v1524
        %v1567 = vpack.c.b16 %v1527, %v1526
        %v1568 = vpack.c.b16 %v1529, %v1528
        %v1569 = vpack.c.b16 %v1531, %v1530
        %v1570 = vpack.c.b16 %v1533, %v1532
        %v1571 = vpack.c.b16 %v1535, %v1534
        %v1572 = vpack.c.b16 %v1537, %v1536
        %v1573 = vpack.c.b16 %v1539, %v1538
        %v1574 = vpack.c.b16 %v1541, %v1540
        %v1575 = vpack.c.b16 %v1543, %v1542
        %v1576 = vpack.c.b16 %v1545, %v1544
        %v1577 = vpack.c.b16 %v1547, %v1546
        %v1578 = vpack.c.b16 %v1549, %v1548
        %v1579 = vpack.c.b16 %v1551, %v1550
        %v1580 = vpack.c.b16 %v1553, %v1552
        %v1581 = vpack.c.b16 %v1555, %v1554
        %v1582 = vpack.c.b16 %v1557, %v1556
        %v1583 = vpack.c.b16 %v1559, %v1558
        %1608 = vmatprep.subr.bf16.mxu0 0
        %1609 = vmatpush1.bf16.msra.mxu0 %v1567
        %1610 = vmatprep.subr.bf16.mxu0 0
        %1611 = vmatpush1.bf16.msra.mxu0 %v1566
        %1612 = vmatprep.subr.bf16.mxu0 0
        %1613 = vmatpush1.bf16.msra.mxu0 %v1565
        %1614 = vmatprep.subr.bf16.mxu0 0
        %1615 = vmatpush1.bf16.msra.mxu0 %v1564
        %1616 = vmatprep.subr.bf16.mxu0 0
        %1617 = vmatpush1.bf16.msra.mxu0 %v1563
        %1618 = vmatprep.subr.bf16.mxu0 0
        %1619 = vmatpush1.bf16.msra.mxu0 %v1562
        %1620 = vmatprep.subr.bf16.mxu0 0
        %1621 = vmatpush1.bf16.msra.mxu0 %v1561
        %1622 = vmatprep.subr.bf16.mxu0 0
        %1623 = vmatpush1.bf16.msra.mxu0 %v1560
        %1624 = vmatprep.subr.bf16.mxu0 0
        %1625 = vmatpush2.bf16.msra.mxu0 %v1575
        %1626 = vmatprep.subr.bf16.mxu0 0
        %1627 = vmatpush2.bf16.msra.mxu0 %v1574
        %1628 = vmatprep.subr.bf16.mxu0 0
        %1629 = vmatpush2.bf16.msra.mxu0 %v1573
        %1630 = vmatprep.subr.bf16.mxu0 0
        %1631 = vmatpush2.bf16.msra.mxu0 %v1572
        %1632 = vmatprep.subr.bf16.mxu0 0
        %1633 = vmatpush2.bf16.msra.mxu0 %v1571
        %1634 = vmatprep.subr.bf16.mxu0 0
        %1635 = vmatpush2.bf16.msra.mxu0 %v1570
        %1636 = vmatprep.subr.bf16.mxu0 0
        %1637 = vmatpush2.bf16.msra.mxu0 %v1569
        %1638 = vmatprep.subr.bf16.mxu0 0
        %1639 = vmatpush2.bf16.msra.mxu0 %v1568
        %1640 = vmatprep.mubr.bf16.mxu0 %v1407
        %1641 = vmatmul.mubr.bf16.gmra.mxu0 %v1406
        %v1642 = vpop.f32.mrf.mxu0
        %v1643 = vadd.f32 %v1462, %v1642
        %v1644 = vpop.f32.mrf.mxu0
        %v1645 = vpop.f32.mrf.mxu0
        %v1646 = vadd.f32 %v1462, %v1645
        %v1647 = vpop.f32.mrf.mxu0
        %1648 = vdwg.mxu0
        %1649 = vmatprep.subr.bf16.mxu0 0
        %1650 = vmatpush1.bf16.msra.mxu0 %v1583
        %1651 = vmatprep.subr.bf16.mxu0 0
        %1652 = vmatpush1.bf16.msra.mxu0 %v1582
        %1653 = vmatprep.subr.bf16.mxu0 0
        %1654 = vmatpush1.bf16.msra.mxu0 %v1581
        %1655 = vmatprep.subr.bf16.mxu0 0
        %1656 = vmatpush1.bf16.msra.mxu0 %v1580
        %1657 = vmatprep.subr.bf16.mxu0 0
        %1658 = vmatpush1.bf16.msra.mxu0 %v1579
        %1659 = vmatprep.subr.bf16.mxu0 0
        %1660 = vmatpush1.bf16.msra.mxu0 %v1578
        %1661 = vmatprep.subr.bf16.mxu0 0
        %1662 = vmatpush1.bf16.msra.mxu0 %v1577
        %1663 = vmatprep.subr.bf16.mxu0 0
        %1664 = vmatpush1.bf16.msra.mxu0 %v1576
        %1665 = vmatprep.subr.bf16.mxu0 0
        %1666 = vmatpush2.bf16.msra.mxu0 0
        %1667 = vmatprep.subr.bf16.mxu0 0
        %1668 = vmatpush2.bf16.msra.mxu0 0
        %1669 = vmatprep.subr.bf16.mxu0 0
        %1670 = vmatpush2.bf16.msra.mxu0 0
        %1671 = vmatprep.subr.bf16.mxu0 0
        %1672 = vmatpush2.bf16.msra.mxu0 0
        %1673 = vmatprep.subr.bf16.mxu0 0
        %1674 = vmatpush2.bf16.msra.mxu0 0
        %1675 = vmatprep.subr.bf16.mxu0 0
        %1676 = vmatpush2.bf16.msra.mxu0 0
        %1677 = vmatprep.subr.bf16.mxu0 0
        %1678 = vmatpush2.bf16.msra.mxu0 0
        %1679 = vmatprep.subr.bf16.mxu0 0
        %1680 = vmatpush2.bf16.msra.mxu0 0
        %1681 = vmatprep.mubr.bf16.mxu0 0
        %1682 = vmatmul.mubr.bf16.gmra.mxu0 %v1408
        %v1683 = vpop.f32.mrf.mxu0
        %v1684 = vadd.f32 %v1643, %v1683
        %v1685 = vpop.f32.mrf.mxu0
        %v1686 = vpop.f32.mrf.mxu0
        %v1687 = vadd.f32 %v1646, %v1686
        %v1688 = vpop.f32.mrf.mxu0
        %1689 = vdwg.mxu0
        %vm1690 = vcmp.ge.f32.partialorder %v1684, 0.0
        %vm1691 = vcmp.ge.f32.partialorder %v1687, 0.0
        %v1692 = vmul.f32 %v1684, 0.01
        %v1693 = vmul.f32 %v1687, 0.01
        %v1694 = vsel %vm1690, %v1684, %v1692
        %v1695 = vsel %vm1691, %v1687, %v1693
        %1696 = vst [vmem:[#allocation2 + $0x8] sm:$0xff] %v1694
        %1697 = vst [vmem:[#allocation2 + $0x10] sm:$0xff] %v1695
        %v1698 = vld [vmem:[#allocation2 + $0x4] sm:$0xff]
        %v1699 = vld [vmem:[#allocation2 + $0xc] sm:$0xff]
        %v1700 = vld [vmem:[#allocation2 + $0x6] sm:$0xff]
        %v1701 = vld [vmem:[#allocation2 + $0xe] sm:$0xff]
        %v1702 = vld [vmem:[#allocation2 + $0x8] sm:$0xff]
        %v1703 = vld [vmem:[#allocation2 + $0x10] sm:$0xff]
        %v1704 = vpack.c.bf16 %v1699, %v1698
        %v1705 = vpack.c.bf16 %v1701, %v1700
        %v1706 = vpack.c.bf16 %v1703, %v1702
        %v1707 = vld [vmem:[#allocation12] sm:$0xf]
        %v1708 = vld [vmem:[#allocation12 + $0x4] sm:$0xf]
        %v1709 = vld [vmem:[#allocation12 + $0x8] sm:$0xf]
        %v1710 = vld [vmem:[#allocation12 + $0xc] sm:$0xf]
        %v1711 = vld [vmem:[#allocation12 + $0x10] sm:$0xf]
        %v1712 = vld [vmem:[#allocation12 + $0x14] sm:$0xf]
        %v1713 = vld [vmem:[#allocation12 + $0x18] sm:$0xf]
        %v1714 = vld [vmem:[#allocation12 + $0x1c] sm:$0xf]
        %v1715 = vld [vmem:[#allocation12 + $0x20] sm:$0xf]
        %v1716 = vld [vmem:[#allocation12 + $0x24] sm:$0xf]
        %v1717 = vld [vmem:[#allocation12 + $0x28] sm:$0xf]
        %v1718 = vld [vmem:[#allocation12 + $0x2c] sm:$0xf]
        %v1719 = vld [vmem:[#allocation12 + $0x30] sm:$0xf]
        %v1720 = vld [vmem:[#allocation12 + $0x34] sm:$0xf]
        %v1721 = vld [vmem:[#allocation12 + $0x38] sm:$0xf]
        %v1722 = vld [vmem:[#allocation12 + $0x3c] sm:$0xf]
        %v1723 = vld [vmem:[#allocation12 + $0x40] sm:$0xf]
        %v1724 = vld [vmem:[#allocation12 + $0x44] sm:$0xf]
        %v1725 = vld [vmem:[#allocation12 + $0x48] sm:$0xf]
        %v1726 = vld [vmem:[#allocation12 + $0x4c] sm:$0xf]
        %v1727 = vld [vmem:[#allocation12 + $0x50] sm:$0xf]
        %v1728 = vld [vmem:[#allocation12 + $0x54] sm:$0xf]
        %v1729 = vld [vmem:[#allocation12 + $0x58] sm:$0xf]
        %v1730 = vld [vmem:[#allocation12 + $0x5c] sm:$0xf]
        %v1731 = vld [vmem:[#allocation12 + $0x60] sm:$0xf]
        %v1732 = vld [vmem:[#allocation12 + $0x64] sm:$0xf]
        %v1733 = vld [vmem:[#allocation12 + $0x68] sm:$0xf]
        %v1734 = vld [vmem:[#allocation12 + $0x6c] sm:$0xf]
        %v1735 = vld [vmem:[#allocation12 + $0x70] sm:$0xf]
        %v1736 = vld [vmem:[#allocation12 + $0x74] sm:$0xf]
        %v1737 = vld [vmem:[#allocation12 + $0x78] sm:$0xf]
        %v1738 = vld [vmem:[#allocation12 + $0x7c] sm:$0xf]
        %v1739 = vld [vmem:[#allocation12 + $0x80] sm:$0xf]
        %v1740 = vld [vmem:[#allocation12 + $0x84] sm:$0xf]
        %v1741 = vld [vmem:[#allocation12 + $0x88] sm:$0xf]
        %v1742 = vld [vmem:[#allocation12 + $0x8c] sm:$0xf]
        %v1743 = vld [vmem:[#allocation12 + $0x90] sm:$0xf]
        %v1744 = vld [vmem:[#allocation12 + $0x94] sm:$0xf]
        %v1745 = vld [vmem:[#allocation12 + $0x98] sm:$0xf]
        %v1746 = vld [vmem:[#allocation12 + $0x9c] sm:$0xf]
        %v1747 = vld [vmem:[#allocation12 + $0xa0] sm:$0xf]
        %v1748 = vld [vmem:[#allocation12 + $0xa4] sm:$0xf]
        %v1749 = vld [vmem:[#allocation12 + $0xa8] sm:$0xf]
        %v1750 = vld [vmem:[#allocation12 + $0xac] sm:$0xf]
        %v1751 = vld [vmem:[#allocation12 + $0xb0] sm:$0xf]
        %v1752 = vld [vmem:[#allocation12 + $0xb4] sm:$0xf]
        %v1753 = vld [vmem:[#allocation12 + $0xb8] sm:$0xf]
        %v1754 = vld [vmem:[#allocation12 + $0xbc] sm:$0xf]
        %v1755 = vld [vmem:[%s10] sm:$0x1]
        %v1757 = vlaneseq
        %v1758 = vshrl.u32 %v1757, 7
        %v1759 = vsub.s32 0, %v1758
        %v1760 = vrot.slane %v1755, %v1759
        %v1810 = vunpack.c.l.b16 %v1707
        %v1811 = vunpack.c.l.b16 %v1708
        %v1812 = vunpack.c.l.b16 %v1709
        %v1813 = vunpack.c.l.b16 %v1710
        %v1814 = vunpack.c.l.b16 %v1711
        %v1815 = vunpack.c.l.b16 %v1712
        %v1816 = vunpack.c.l.b16 %v1713
        %v1817 = vunpack.c.l.b16 %v1714
        %v1818 = vunpack.c.l.b16 %v1715
        %v1819 = vunpack.c.l.b16 %v1716
        %v1820 = vunpack.c.l.b16 %v1717
        %v1821 = vunpack.c.l.b16 %v1718
        %v1822 = vunpack.c.l.b16 %v1719
        %v1823 = vunpack.c.l.b16 %v1720
        %v1824 = vunpack.c.l.b16 %v1721
        %v1825 = vunpack.c.l.b16 %v1722
        %v1826 = vunpack.c.l.b16 %v1723
        %v1827 = vunpack.c.l.b16 %v1724
        %v1828 = vunpack.c.l.b16 %v1725
        %v1829 = vunpack.c.l.b16 %v1726
        %v1830 = vunpack.c.l.b16 %v1727
        %v1831 = vunpack.c.l.b16 %v1728
        %v1832 = vunpack.c.l.b16 %v1729
        %v1833 = vunpack.c.l.b16 %v1730
        %v1834 = vunpack.c.l.b16 %v1731
        %v1835 = vunpack.c.l.b16 %v1732
        %v1836 = vunpack.c.l.b16 %v1733
        %v1837 = vunpack.c.l.b16 %v1734
        %v1838 = vunpack.c.l.b16 %v1735
        %v1839 = vunpack.c.l.b16 %v1736
        %v1840 = vunpack.c.l.b16 %v1737
        %v1841 = vunpack.c.l.b16 %v1738
        %v1842 = vunpack.c.l.b16 %v1739
        %v1843 = vunpack.c.l.b16 %v1740
        %v1844 = vunpack.c.l.b16 %v1741
        %v1845 = vunpack.c.l.b16 %v1742
        %v1846 = vunpack.c.l.b16 %v1743
        %v1847 = vunpack.c.l.b16 %v1744
        %v1848 = vunpack.c.l.b16 %v1745
        %v1849 = vunpack.c.l.b16 %v1746
        %v1850 = vunpack.c.l.b16 %v1747
        %v1851 = vunpack.c.l.b16 %v1748
        %v1852 = vunpack.c.l.b16 %v1749
        %v1853 = vunpack.c.l.b16 %v1750
        %v1854 = vunpack.c.l.b16 %v1751
        %v1855 = vunpack.c.l.b16 %v1752
        %v1856 = vunpack.c.l.b16 %v1753
        %v1857 = vunpack.c.l.b16 %v1754
        %v1858 = vpack.c.b16 %v1811, %v1810
        %v1859 = vpack.c.b16 %v1813, %v1812
        %v1860 = vpack.c.b16 %v1815, %v1814
        %v1861 = vpack.c.b16 %v1817, %v1816
        %v1862 = vpack.c.b16 %v1819, %v1818
        %v1863 = vpack.c.b16 %v1821, %v1820
        %v1864 = vpack.c.b16 %v1823, %v1822
        %v1865 = vpack.c.b16 %v1825, %v1824
        %v1866 = vpack.c.b16 %v1827, %v1826
        %v1867 = vpack.c.b16 %v1829, %v1828
        %v1868 = vpack.c.b16 %v1831, %v1830
        %v1869 = vpack.c.b16 %v1833, %v1832
        %v1870 = vpack.c.b16 %v1835, %v1834
        %v1871 = vpack.c.b16 %v1837, %v1836
        %v1872 = vpack.c.b16 %v1839, %v1838
        %v1873 = vpack.c.b16 %v1841, %v1840
        %v1874 = vpack.c.b16 %v1843, %v1842
        %v1875 = vpack.c.b16 %v1845, %v1844
        %v1876 = vpack.c.b16 %v1847, %v1846
        %v1877 = vpack.c.b16 %v1849, %v1848
        %v1878 = vpack.c.b16 %v1851, %v1850
        %v1879 = vpack.c.b16 %v1853, %v1852
        %v1880 = vpack.c.b16 %v1855, %v1854
        %v1881 = vpack.c.b16 %v1857, %v1856
        %1906 = vmatprep.subr.bf16.mxu0 0
        %1907 = vmatpush1.bf16.msra.mxu0 %v1865
        %1908 = vmatprep.subr.bf16.mxu0 0
        %1909 = vmatpush1.bf16.msra.mxu0 %v1864
        %1910 = vmatprep.subr.bf16.mxu0 0
        %1911 = vmatpush1.bf16.msra.mxu0 %v1863
        %1912 = vmatprep.subr.bf16.mxu0 0
        %1913 = vmatpush1.bf16.msra.mxu0 %v1862
        %1914 = vmatprep.subr.bf16.mxu0 0
        %1915 = vmatpush1.bf16.msra.mxu0 %v1861
        %1916 = vmatprep.subr.bf16.mxu0 0
        %1917 = vmatpush1.bf16.msra.mxu0 %v1860
        %1918 = vmatprep.subr.bf16.mxu0 0
        %1919 = vmatpush1.bf16.msra.mxu0 %v1859
        %1920 = vmatprep.subr.bf16.mxu0 0
        %1921 = vmatpush1.bf16.msra.mxu0 %v1858
        %1922 = vmatprep.subr.bf16.mxu0 0
        %1923 = vmatpush2.bf16.msra.mxu0 %v1873
        %1924 = vmatprep.subr.bf16.mxu0 0
        %1925 = vmatpush2.bf16.msra.mxu0 %v1872
        %1926 = vmatprep.subr.bf16.mxu0 0
        %1927 = vmatpush2.bf16.msra.mxu0 %v1871
        %1928 = vmatprep.subr.bf16.mxu0 0
        %1929 = vmatpush2.bf16.msra.mxu0 %v1870
        %1930 = vmatprep.subr.bf16.mxu0 0
        %1931 = vmatpush2.bf16.msra.mxu0 %v1869
        %1932 = vmatprep.subr.bf16.mxu0 0
        %1933 = vmatpush2.bf16.msra.mxu0 %v1868
        %1934 = vmatprep.subr.bf16.mxu0 0
        %1935 = vmatpush2.bf16.msra.mxu0 %v1867
        %1936 = vmatprep.subr.bf16.mxu0 0
        %1937 = vmatpush2.bf16.msra.mxu0 %v1866
        %1938 = vmatprep.mubr.bf16.mxu0 %v1705
        %1939 = vmatmul.mubr.bf16.gmra.mxu0 %v1704
        %v1940 = vpop.f32.mrf.mxu0
        %v1941 = vadd.f32 %v1760, %v1940
        %v1942 = vpop.f32.mrf.mxu0
        %v1943 = vpop.f32.mrf.mxu0
        %v1944 = vadd.f32 %v1760, %v1943
        %v1945 = vpop.f32.mrf.mxu0
        %1946 = vdwg.mxu0
        %1947 = vmatprep.subr.bf16.mxu0 0
        %1948 = vmatpush1.bf16.msra.mxu0 %v1881
        %1949 = vmatprep.subr.bf16.mxu0 0
        %1950 = vmatpush1.bf16.msra.mxu0 %v1880
        %1951 = vmatprep.subr.bf16.mxu0 0
        %1952 = vmatpush1.bf16.msra.mxu0 %v1879
        %1953 = vmatprep.subr.bf16.mxu0 0
        %1954 = vmatpush1.bf16.msra.mxu0 %v1878
        %1955 = vmatprep.subr.bf16.mxu0 0
        %1956 = vmatpush1.bf16.msra.mxu0 %v1877
        %1957 = vmatprep.subr.bf16.mxu0 0
        %1958 = vmatpush1.bf16.msra.mxu0 %v1876
        %1959 = vmatprep.subr.bf16.mxu0 0
        %1960 = vmatpush1.bf16.msra.mxu0 %v1875
        %1961 = vmatprep.subr.bf16.mxu0 0
        %1962 = vmatpush1.bf16.msra.mxu0 %v1874
        %1963 = vmatprep.subr.bf16.mxu0 0
        %1964 = vmatpush2.bf16.msra.mxu0 0
        %1965 = vmatprep.subr.bf16.mxu0 0
        %1966 = vmatpush2.bf16.msra.mxu0 0
        %1967 = vmatprep.subr.bf16.mxu0 0
        %1968 = vmatpush2.bf16.msra.mxu0 0
        %1969 = vmatprep.subr.bf16.mxu0 0
        %1970 = vmatpush2.bf16.msra.mxu0 0
        %1971 = vmatprep.subr.bf16.mxu0 0
        %1972 = vmatpush2.bf16.msra.mxu0 0
        %1973 = vmatprep.subr.bf16.mxu0 0
        %1974 = vmatpush2.bf16.msra.mxu0 0
        %1975 = vmatprep.subr.bf16.mxu0 0
        %1976 = vmatpush2.bf16.msra.mxu0 0
        %1977 = vmatprep.subr.bf16.mxu0 0
        %1978 = vmatpush2.bf16.msra.mxu0 0
        %1979 = vmatprep.mubr.bf16.mxu0 0
        %1980 = vmatmul.mubr.bf16.gmra.mxu0 %v1706
        %v1981 = vpop.f32.mrf.mxu0
        %v1982 = vadd.f32 %v1941, %v1981
        %v1983 = vpop.f32.mrf.mxu0
        %v1984 = vpop.f32.mrf.mxu0
        %v1985 = vadd.f32 %v1944, %v1984
        %v1986 = vpop.f32.mrf.mxu0
        %1987 = vdwg.mxu0
        %vm1988 = vcmp.ge.f32.partialorder %v1982, 0.0
        %vm1989 = vcmp.ge.f32.partialorder %v1985, 0.0
        %v1990 = vmul.f32 %v1982, 0.01
        %v1991 = vmul.f32 %v1985, 0.01
        %v1992 = vsel %vm1988, %v1982, %v1990
        %v1993 = vsel %vm1989, %v1985, %v1991
        %v1994 = vadd.f32 %v1992, %v1396
        %v1995 = vadd.f32 %v1993, %v1397
        %1996 = vst [vmem:[#allocation2 + $0x8] sm:$0xff] %v1994
        %1997 = vst [vmem:[#allocation2 + $0x10] sm:$0xff] %v1995
        %v1998 = vld [vmem:[#allocation2] sm:$0xff]
        %v1999 = vld [vmem:[#allocation2 + $0x8] sm:$0xff]
        %v2000 = vld [vmem:[#allocation2 + $0x4] sm:$0xff]
        %v2001 = vld [vmem:[#allocation2 + $0xc] sm:$0xff]
        %v2002 = vld [vmem:[#allocation2 + $0x8] sm:$0xff]
        %v2003 = vld [vmem:[#allocation2 + $0x10] sm:$0xff]
        %v2004 = vpack.c.bf16 %v1999, %v1998
        %v2005 = vpack.c.bf16 %v2001, %v2000
        %v2006 = vpack.c.bf16 %v2003, %v2002
        %v2007 = vld [vmem:[#allocation14] sm:$0xf]
        %v2008 = vld [vmem:[#allocation14 + $0x4] sm:$0xf]
        %v2009 = vld [vmem:[#allocation14 + $0x8] sm:$0xf]
        %v2010 = vld [vmem:[#allocation14 + $0xc] sm:$0xf]
        %v2011 = vld [vmem:[#allocation14 + $0x10] sm:$0xf]
        %v2012 = vld [vmem:[#allocation14 + $0x14] sm:$0xf]
        %v2013 = vld [vmem:[#allocation14 + $0x18] sm:$0xf]
        %v2014 = vld [vmem:[#allocation14 + $0x1c] sm:$0xf]
        %v2015 = vld [vmem:[#allocation14 + $0x20] sm:$0xf]
        %v2016 = vld [vmem:[#allocation14 + $0x24] sm:$0xf]
        %v2017 = vld [vmem:[#allocation14 + $0x28] sm:$0xf]
        %v2018 = vld [vmem:[#allocation14 + $0x2c] sm:$0xf]
        %v2019 = vld [vmem:[#allocation14 + $0x30] sm:$0xf]
        %v2020 = vld [vmem:[#allocation14 + $0x34] sm:$0xf]
        %v2021 = vld [vmem:[#allocation14 + $0x38] sm:$0xf]
        %v2022 = vld [vmem:[#allocation14 + $0x3c] sm:$0xf]
        %v2023 = vld [vmem:[#allocation14 + $0x40] sm:$0xf]
        %v2024 = vld [vmem:[#allocation14 + $0x44] sm:$0xf]
        %v2025 = vld [vmem:[#allocation14 + $0x48] sm:$0xf]
        %v2026 = vld [vmem:[#allocation14 + $0x4c] sm:$0xf]
        %v2027 = vld [vmem:[#allocation14 + $0x50] sm:$0xf]
        %v2028 = vld [vmem:[#allocation14 + $0x54] sm:$0xf]
        %v2029 = vld [vmem:[#allocation14 + $0x58] sm:$0xf]
        %v2030 = vld [vmem:[#allocation14 + $0x5c] sm:$0xf]
        %v2031 = vld [vmem:[#allocation14 + $0x60] sm:$0xf]
        %v2032 = vld [vmem:[#allocation14 + $0x64] sm:$0xf]
        %v2033 = vld [vmem:[#allocation14 + $0x68] sm:$0xf]
        %v2034 = vld [vmem:[#allocation14 + $0x6c] sm:$0xf]
        %v2035 = vld [vmem:[#allocation14 + $0x70] sm:$0xf]
        %v2036 = vld [vmem:[#allocation14 + $0x74] sm:$0xf]
        %v2037 = vld [vmem:[#allocation14 + $0x78] sm:$0xf]
        %v2038 = vld [vmem:[#allocation14 + $0x7c] sm:$0xf]
        %v2039 = vld [vmem:[#allocation14 + $0x80] sm:$0xf]
        %v2040 = vld [vmem:[#allocation14 + $0x84] sm:$0xf]
        %v2041 = vld [vmem:[#allocation14 + $0x88] sm:$0xf]
        %v2042 = vld [vmem:[#allocation14 + $0x8c] sm:$0xf]
        %v2043 = vld [vmem:[#allocation14 + $0x90] sm:$0xf]
        %v2044 = vld [vmem:[#allocation14 + $0x94] sm:$0xf]
        %v2045 = vld [vmem:[#allocation14 + $0x98] sm:$0xf]
        %v2046 = vld [vmem:[#allocation14 + $0x9c] sm:$0xf]
        %v2047 = vld [vmem:[#allocation14 + $0xa0] sm:$0xf]
        %v2048 = vld [vmem:[#allocation14 + $0xa4] sm:$0xf]
        %v2049 = vld [vmem:[#allocation14 + $0xa8] sm:$0xf]
        %v2050 = vld [vmem:[#allocation14 + $0xac] sm:$0xf]
        %v2051 = vld [vmem:[#allocation14 + $0xb0] sm:$0xf]
        %v2052 = vld [vmem:[#allocation14 + $0xb4] sm:$0xf]
        %v2053 = vld [vmem:[#allocation14 + $0xb8] sm:$0xf]
        %v2054 = vld [vmem:[#allocation14 + $0xbc] sm:$0xf]
        %v2055 = vld [vmem:[%s12] sm:$0x1]
        %v2057 = vlaneseq
        %v2058 = vshrl.u32 %v2057, 7
        %v2059 = vsub.s32 0, %v2058
        %v2060 = vrot.slane %v2055, %v2059
        %v2110 = vunpack.c.l.b16 %v2007
        %v2111 = vunpack.c.l.b16 %v2008
        %v2112 = vunpack.c.l.b16 %v2009
        %v2113 = vunpack.c.l.b16 %v2010
        %v2114 = vunpack.c.l.b16 %v2011
        %v2115 = vunpack.c.l.b16 %v2012
        %v2116 = vunpack.c.l.b16 %v2013
        %v2117 = vunpack.c.l.b16 %v2014
        %v2118 = vunpack.c.l.b16 %v2015
        %v2119 = vunpack.c.l.b16 %v2016
        %v2120 = vunpack.c.l.b16 %v2017
        %v2121 = vunpack.c.l.b16 %v2018
        %v2122 = vunpack.c.l.b16 %v2019
        %v2123 = vunpack.c.l.b16 %v2020
        %v2124 = vunpack.c.l.b16 %v2021
        %v2125 = vunpack.c.l.b16 %v2022
        %v2126 = vunpack.c.l.b16 %v2023
        %v2127 = vunpack.c.l.b16 %v2024
        %v2128 = vunpack.c.l.b16 %v2025
        %v2129 = vunpack.c.l.b16 %v2026
        %v2130 = vunpack.c.l.b16 %v2027
        %v2131 = vunpack.c.l.b16 %v2028
        %v2132 = vunpack.c.l.b16 %v2029
        %v2133 = vunpack.c.l.b16 %v2030
        %v2134 = vunpack.c.l.b16 %v2031
        %v2135 = vunpack.c.l.b16 %v2032
        %v2136 = vunpack.c.l.b16 %v2033
        %v2137 = vunpack.c.l.b16 %v2034
        %v2138 = vunpack.c.l.b16 %v2035
        %v2139 = vunpack.c.l.b16 %v2036
        %v2140 = vunpack.c.l.b16 %v2037
        %v2141 = vunpack.c.l.b16 %v2038
        %v2142 = vunpack.c.l.b16 %v2039
        %v2143 = vunpack.c.l.b16 %v2040
        %v2144 = vunpack.c.l.b16 %v2041
        %v2145 = vunpack.c.l.b16 %v2042
        %v2146 = vunpack.c.l.b16 %v2043
        %v2147 = vunpack.c.l.b16 %v2044
        %v2148 = vunpack.c.l.b16 %v2045
        %v2149 = vunpack.c.l.b16 %v2046
        %v2150 = vunpack.c.l.b16 %v2047
        %v2151 = vunpack.c.l.b16 %v2048
        %v2152 = vunpack.c.l.b16 %v2049
        %v2153 = vunpack.c.l.b16 %v2050
        %v2154 = vunpack.c.l.b16 %v2051
        %v2155 = vunpack.c.l.b16 %v2052
        %v2156 = vunpack.c.l.b16 %v2053
        %v2157 = vunpack.c.l.b16 %v2054
        %v2158 = vpack.c.b16 %v2111, %v2110
        %v2159 = vpack.c.b16 %v2113, %v2112
        %v2160 = vpack.c.b16 %v2115, %v2114
        %v2161 = vpack.c.b16 %v2117, %v2116
        %v2162 = vpack.c.b16 %v2119, %v2118
        %v2163 = vpack.c.b16 %v2121, %v2120
        %v2164 = vpack.c.b16 %v2123, %v2122
        %v2165 = vpack.c.b16 %v2125, %v2124
        %v2166 = vpack.c.b16 %v2127, %v2126
        %v2167 = vpack.c.b16 %v2129, %v2128
        %v2168 = vpack.c.b16 %v2131, %v2130
        %v2169 = vpack.c.b16 %v2133, %v2132
        %v2170 = vpack.c.b16 %v2135, %v2134
        %v2171 = vpack.c.b16 %v2137, %v2136
        %v2172 = vpack.c.b16 %v2139, %v2138
        %v2173 = vpack.c.b16 %v2141, %v2140
        %v2174 = vpack.c.b16 %v2143, %v2142
        %v2175 = vpack.c.b16 %v2145, %v2144
        %v2176 = vpack.c.b16 %v2147, %v2146
        %v2177 = vpack.c.b16 %v2149, %v2148
        %v2178 = vpack.c.b16 %v2151, %v2150
        %v2179 = vpack.c.b16 %v2153, %v2152
        %v2180 = vpack.c.b16 %v2155, %v2154
        %v2181 = vpack.c.b16 %v2157, %v2156
        %2206 = vmatprep.subr.bf16.mxu0 0
        %2207 = vmatpush1.bf16.msra.mxu0 %v2165
        %2208 = vmatprep.subr.bf16.mxu0 0
        %2209 = vmatpush1.bf16.msra.mxu0 %v2164
        %2210 = vmatprep.subr.bf16.mxu0 0
        %2211 = vmatpush1.bf16.msra.mxu0 %v2163
        %2212 = vmatprep.subr.bf16.mxu0 0
        %2213 = vmatpush1.bf16.msra.mxu0 %v2162
        %2214 = vmatprep.subr.bf16.mxu0 0
        %2215 = vmatpush1.bf16.msra.mxu0 %v2161
        %2216 = vmatprep.subr.bf16.mxu0 0
        %2217 = vmatpush1.bf16.msra.mxu0 %v2160
        %2218 = vmatprep.subr.bf16.mxu0 0
        %2219 = vmatpush1.bf16.msra.mxu0 %v2159
        %2220 = vmatprep.subr.bf16.mxu0 0
        %2221 = vmatpush1.bf16.msra.mxu0 %v2158
        %2222 = vmatprep.subr.bf16.mxu0 0
        %2223 = vmatpush2.bf16.msra.mxu0 %v2173
        %2224 = vmatprep.subr.bf16.mxu0 0
        %2225 = vmatpush2.bf16.msra.mxu0 %v2172
        %2226 = vmatprep.subr.bf16.mxu0 0
        %2227 = vmatpush2.bf16.msra.mxu0 %v2171
        %2228 = vmatprep.subr.bf16.mxu0 0
        %2229 = vmatpush2.bf16.msra.mxu0 %v2170
        %2230 = vmatprep.subr.bf16.mxu0 0
        %2231 = vmatpush2.bf16.msra.mxu0 %v2169
        %2232 = vmatprep.subr.bf16.mxu0 0
        %2233 = vmatpush2.bf16.msra.mxu0 %v2168
        %2234 = vmatprep.subr.bf16.mxu0 0
        %2235 = vmatpush2.bf16.msra.mxu0 %v2167
        %2236 = vmatprep.subr.bf16.mxu0 0
        %2237 = vmatpush2.bf16.msra.mxu0 %v2166
        %2238 = vmatprep.mubr.bf16.mxu0 %v2005
        %2239 = vmatmul.mubr.bf16.gmra.mxu0 %v2004
        %v2240 = vpop.f32.mrf.mxu0
        %v2241 = vadd.f32 %v2060, %v2240
        %v2242 = vpop.f32.mrf.mxu0
        %v2243 = vpop.f32.mrf.mxu0
        %v2244 = vadd.f32 %v2060, %v2243
        %v2245 = vpop.f32.mrf.mxu0
        %2246 = vdwg.mxu0
        %2247 = vmatprep.subr.bf16.mxu0 0
        %2248 = vmatpush1.bf16.msra.mxu0 %v2181
        %2249 = vmatprep.subr.bf16.mxu0 0
        %2250 = vmatpush1.bf16.msra.mxu0 %v2180
        %2251 = vmatprep.subr.bf16.mxu0 0
        %2252 = vmatpush1.bf16.msra.mxu0 %v2179
        %2253 = vmatprep.subr.bf16.mxu0 0
        %2254 = vmatpush1.bf16.msra.mxu0 %v2178
        %2255 = vmatprep.subr.bf16.mxu0 0
        %2256 = vmatpush1.bf16.msra.mxu0 %v2177
        %2257 = vmatprep.subr.bf16.mxu0 0
        %2258 = vmatpush1.bf16.msra.mxu0 %v2176
        %2259 = vmatprep.subr.bf16.mxu0 0
        %2260 = vmatpush1.bf16.msra.mxu0 %v2175
        %2261 = vmatprep.subr.bf16.mxu0 0
        %2262 = vmatpush1.bf16.msra.mxu0 %v2174
        %2263 = vmatprep.subr.bf16.mxu0 0
        %2264 = vmatpush2.bf16.msra.mxu0 0
        %2265 = vmatprep.subr.bf16.mxu0 0
        %2266 = vmatpush2.bf16.msra.mxu0 0
        %2267 = vmatprep.subr.bf16.mxu0 0
        %2268 = vmatpush2.bf16.msra.mxu0 0
        %2269 = vmatprep.subr.bf16.mxu0 0
        %2270 = vmatpush2.bf16.msra.mxu0 0
        %2271 = vmatprep.subr.bf16.mxu0 0
        %2272 = vmatpush2.bf16.msra.mxu0 0
        %2273 = vmatprep.subr.bf16.mxu0 0
        %2274 = vmatpush2.bf16.msra.mxu0 0
        %2275 = vmatprep.subr.bf16.mxu0 0
        %2276 = vmatpush2.bf16.msra.mxu0 0
        %2277 = vmatprep.subr.bf16.mxu0 0
        %2278 = vmatpush2.bf16.msra.mxu0 0
        %2279 = vmatprep.mubr.bf16.mxu0 0
        %2280 = vmatmul.mubr.bf16.gmra.mxu0 %v2006
        %v2281 = vpop.f32.mrf.mxu0
        %v2282 = vadd.f32 %v2241, %v2281
        %v2283 = vpop.f32.mrf.mxu0
        %v2284 = vpop.f32.mrf.mxu0
        %v2285 = vadd.f32 %v2244, %v2284
        %v2286 = vpop.f32.mrf.mxu0
        %2287 = vdwg.mxu0
        %vm2288 = vcmp.ge.f32.partialorder %v2282, 0.0
        %vm2289 = vcmp.ge.f32.partialorder %v2285, 0.0
        %v2290 = vmul.f32 %v2282, 0.01
        %v2291 = vmul.f32 %v2285, 0.01
        %v2292 = vsel %vm2288, %v2282, %v2290
        %v2293 = vsel %vm2289, %v2285, %v2291
        %2294 = vst [vmem:[#allocation2 + $0x8] sm:$0xff] %v2292
        %2295 = vst [vmem:[#allocation2 + $0x10] sm:$0xff] %v2293
        %v2296 = vld [vmem:[#allocation2] sm:$0xff]
        %v2297 = vld [vmem:[#allocation2 + $0x8] sm:$0xff]
        %v2298 = vld [vmem:[#allocation2 + $0x4] sm:$0xff]
        %v2299 = vld [vmem:[#allocation2 + $0xc] sm:$0xff]
        %v2300 = vld [vmem:[#allocation2 + $0x8] sm:$0xff]
        %v2301 = vld [vmem:[#allocation2 + $0x10] sm:$0xff]
        %v2302 = vpack.c.bf16 %v2297, %v2296
        %v2303 = vpack.c.bf16 %v2299, %v2298
        %v2304 = vpack.c.bf16 %v2301, %v2300
        %v2305 = vld [vmem:[#allocation15] sm:$0xf]
        %v2306 = vld [vmem:[#allocation15 + $0x4] sm:$0xf]
        %v2307 = vld [vmem:[#allocation15 + $0x8] sm:$0xf]
        %v2308 = vld [vmem:[#allocation15 + $0xc] sm:$0xf]
        %v2309 = vld [vmem:[#allocation15 + $0x10] sm:$0xf]
        %v2310 = vld [vmem:[#allocation15 + $0x14] sm:$0xf]
        %v2311 = vld [vmem:[#allocation15 + $0x18] sm:$0xf]
        %v2312 = vld [vmem:[#allocation15 + $0x1c] sm:$0xf]
        %v2313 = vld [vmem:[#allocation15 + $0x20] sm:$0xf]
        %v2314 = vld [vmem:[#allocation15 + $0x24] sm:$0xf]
        %v2315 = vld [vmem:[#allocation15 + $0x28] sm:$0xf]
        %v2316 = vld [vmem:[#allocation15 + $0x2c] sm:$0xf]
        %v2317 = vld [vmem:[#allocation15 + $0x30] sm:$0xf]
        %v2318 = vld [vmem:[#allocation15 + $0x34] sm:$0xf]
        %v2319 = vld [vmem:[#allocation15 + $0x38] sm:$0xf]
        %v2320 = vld [vmem:[#allocation15 + $0x3c] sm:$0xf]
        %v2321 = vld [vmem:[#allocation15 + $0x40] sm:$0xf]
        %v2322 = vld [vmem:[#allocation15 + $0x44] sm:$0xf]
        %v2323 = vld [vmem:[#allocation15 + $0x48] sm:$0xf]
        %v2324 = vld [vmem:[#allocation15 + $0x4c] sm:$0xf]
        %v2325 = vld [vmem:[#allocation15 + $0x50] sm:$0xf]
        %v2326 = vld [vmem:[#allocation15 + $0x54] sm:$0xf]
        %v2327 = vld [vmem:[#allocation15 + $0x58] sm:$0xf]
        %v2328 = vld [vmem:[#allocation15 + $0x5c] sm:$0xf]
        %v2329 = vld [vmem:[#allocation15 + $0x60] sm:$0xf]
        %v2330 = vld [vmem:[#allocation15 + $0x64] sm:$0xf]
        %v2331 = vld [vmem:[#allocation15 + $0x68] sm:$0xf]
        %v2332 = vld [vmem:[#allocation15 + $0x6c] sm:$0xf]
        %v2333 = vld [vmem:[#allocation15 + $0x70] sm:$0xf]
        %v2334 = vld [vmem:[#allocation15 + $0x74] sm:$0xf]
        %v2335 = vld [vmem:[#allocation15 + $0x78] sm:$0xf]
        %v2336 = vld [vmem:[#allocation15 + $0x7c] sm:$0xf]
        %v2337 = vld [vmem:[#allocation15 + $0x80] sm:$0xf]
        %v2338 = vld [vmem:[#allocation15 + $0x84] sm:$0xf]
        %v2339 = vld [vmem:[#allocation15 + $0x88] sm:$0xf]
        %v2340 = vld [vmem:[#allocation15 + $0x8c] sm:$0xf]
        %v2341 = vld [vmem:[#allocation15 + $0x90] sm:$0xf]
        %v2342 = vld [vmem:[#allocation15 + $0x94] sm:$0xf]
        %v2343 = vld [vmem:[#allocation15 + $0x98] sm:$0xf]
        %v2344 = vld [vmem:[#allocation15 + $0x9c] sm:$0xf]
        %v2345 = vld [vmem:[#allocation15 + $0xa0] sm:$0xf]
        %v2346 = vld [vmem:[#allocation15 + $0xa4] sm:$0xf]
        %v2347 = vld [vmem:[#allocation15 + $0xa8] sm:$0xf]
        %v2348 = vld [vmem:[#allocation15 + $0xac] sm:$0xf]
        %v2349 = vld [vmem:[#allocation15 + $0xb0] sm:$0xf]
        %v2350 = vld [vmem:[#allocation15 + $0xb4] sm:$0xf]
        %v2351 = vld [vmem:[#allocation15 + $0xb8] sm:$0xf]
        %v2352 = vld [vmem:[#allocation15 + $0xbc] sm:$0xf]
        %v2353 = vld [vmem:[%s14] sm:$0x1]
        %v2355 = vlaneseq
        %v2356 = vshrl.u32 %v2355, 7
        %v2357 = vsub.s32 0, %v2356
        %v2358 = vrot.slane %v2353, %v2357
        %v2408 = vunpack.c.l.b16 %v2305
        %v2409 = vunpack.c.l.b16 %v2306
        %v2410 = vunpack.c.l.b16 %v2307
        %v2411 = vunpack.c.l.b16 %v2308
        %v2412 = vunpack.c.l.b16 %v2309
        %v2413 = vunpack.c.l.b16 %v2310
        %v2414 = vunpack.c.l.b16 %v2311
        %v2415 = vunpack.c.l.b16 %v2312
        %v2416 = vunpack.c.l.b16 %v2313
        %v2417 = vunpack.c.l.b16 %v2314
        %v2418 = vunpack.c.l.b16 %v2315
        %v2419 = vunpack.c.l.b16 %v2316
        %v2420 = vunpack.c.l.b16 %v2317
        %v2421 = vunpack.c.l.b16 %v2318
        %v2422 = vunpack.c.l.b16 %v2319
        %v2423 = vunpack.c.l.b16 %v2320
        %v2424 = vunpack.c.l.b16 %v2321
        %v2425 = vunpack.c.l.b16 %v2322
        %v2426 = vunpack.c.l.b16 %v2323
        %v2427 = vunpack.c.l.b16 %v2324
        %v2428 = vunpack.c.l.b16 %v2325
        %v2429 = vunpack.c.l.b16 %v2326
        %v2430 = vunpack.c.l.b16 %v2327
        %v2431 = vunpack.c.l.b16 %v2328
        %v2432 = vunpack.c.l.b16 %v2329
        %v2433 = vunpack.c.l.b16 %v2330
        %v2434 = vunpack.c.l.b16 %v2331
        %v2435 = vunpack.c.l.b16 %v2332
        %v2436 = vunpack.c.l.b16 %v2333
        %v2437 = vunpack.c.l.b16 %v2334
        %v2438 = vunpack.c.l.b16 %v2335
        %v2439 = vunpack.c.l.b16 %v2336
        %v2440 = vunpack.c.l.b16 %v2337
        %v2441 = vunpack.c.l.b16 %v2338
        %v2442 = vunpack.c.l.b16 %v2339
        %v2443 = vunpack.c.l.b16 %v2340
        %v2444 = vunpack.c.l.b16 %v2341
        %v2445 = vunpack.c.l.b16 %v2342
        %v2446 = vunpack.c.l.b16 %v2343
        %v2447 = vunpack.c.l.b16 %v2344
        %v2448 = vunpack.c.l.b16 %v2345
        %v2449 = vunpack.c.l.b16 %v2346
        %v2450 = vunpack.c.l.b16 %v2347
        %v2451 = vunpack.c.l.b16 %v2348
        %v2452 = vunpack.c.l.b16 %v2349
        %v2453 = vunpack.c.l.b16 %v2350
        %v2454 = vunpack.c.l.b16 %v2351
        %v2455 = vunpack.c.l.b16 %v2352
        %v2456 = vpack.c.b16 %v2409, %v2408
        %v2457 = vpack.c.b16 %v2411, %v2410
        %v2458 = vpack.c.b16 %v2413, %v2412
        %v2459 = vpack.c.b16 %v2415, %v2414
        %v2460 = vpack.c.b16 %v2417, %v2416
        %v2461 = vpack.c.b16 %v2419, %v2418
        %v2462 = vpack.c.b16 %v2421, %v2420
        %v2463 = vpack.c.b16 %v2423, %v2422
        %v2464 = vpack.c.b16 %v2425, %v2424
        %v2465 = vpack.c.b16 %v2427, %v2426
        %v2466 = vpack.c.b16 %v2429, %v2428
        %v2467 = vpack.c.b16 %v2431, %v2430
        %v2468 = vpack.c.b16 %v2433, %v2432
        %v2469 = vpack.c.b16 %v2435, %v2434
        %v2470 = vpack.c.b16 %v2437, %v2436
        %v2471 = vpack.c.b16 %v2439, %v2438
        %v2472 = vpack.c.b16 %v2441, %v2440
        %v2473 = vpack.c.b16 %v2443, %v2442
        %v2474 = vpack.c.b16 %v2445, %v2444
        %v2475 = vpack.c.b16 %v2447, %v2446
        %v2476 = vpack.c.b16 %v2449, %v2448
        %v2477 = vpack.c.b16 %v2451, %v2450
        %v2478 = vpack.c.b16 %v2453, %v2452
        %v2479 = vpack.c.b16 %v2455, %v2454
        %2504 = vmatprep.subr.bf16.mxu0 0
        %2505 = vmatpush1.bf16.msra.mxu0 %v2463
        %2506 = vmatprep.subr.bf16.mxu0 0
        %2507 = vmatpush1.bf16.msra.mxu0 %v2462
        %2508 = vmatprep.subr.bf16.mxu0 0
        %2509 = vmatpush1.bf16.msra.mxu0 %v2461
        %2510 = vmatprep.subr.bf16.mxu0 0
        %2511 = vmatpush1.bf16.msra.mxu0 %v2460
        %2512 = vmatprep.subr.bf16.mxu0 0
        %2513 = vmatpush1.bf16.msra.mxu0 %v2459
        %2514 = vmatprep.subr.bf16.mxu0 0
        %2515 = vmatpush1.bf16.msra.mxu0 %v2458
        %2516 = vmatprep.subr.bf16.mxu0 0
        %2517 = vmatpush1.bf16.msra.mxu0 %v2457
        %2518 = vmatprep.subr.bf16.mxu0 0
        %2519 = vmatpush1.bf16.msra.mxu0 %v2456
        %2520 = vmatprep.subr.bf16.mxu0 0
        %2521 = vmatpush2.bf16.msra.mxu0 %v2471
        %2522 = vmatprep.subr.bf16.mxu0 0
        %2523 = vmatpush2.bf16.msra.mxu0 %v2470
        %2524 = vmatprep.subr.bf16.mxu0 0
        %2525 = vmatpush2.bf16.msra.mxu0 %v2469
        %2526 = vmatprep.subr.bf16.mxu0 0
        %2527 = vmatpush2.bf16.msra.mxu0 %v2468
        %2528 = vmatprep.subr.bf16.mxu0 0
        %2529 = vmatpush2.bf16.msra.mxu0 %v2467
        %2530 = vmatprep.subr.bf16.mxu0 0
        %2531 = vmatpush2.bf16.msra.mxu0 %v2466
        %2532 = vmatprep.subr.bf16.mxu0 0
        %2533 = vmatpush2.bf16.msra.mxu0 %v2465
        %2534 = vmatprep.subr.bf16.mxu0 0
        %2535 = vmatpush2.bf16.msra.mxu0 %v2464
        %2536 = vmatprep.mubr.bf16.mxu0 %v2303
        %2537 = vmatmul.mubr.bf16.gmra.mxu0 %v2302
        %v2538 = vpop.f32.mrf.mxu0
        %v2539 = vadd.f32 %v2358, %v2538
        %v2540 = vpop.f32.mrf.mxu0
        %v2541 = vpop.f32.mrf.mxu0
        %v2542 = vadd.f32 %v2358, %v2541
        %v2543 = vpop.f32.mrf.mxu0
        %2544 = vdwg.mxu0
        %2545 = vmatprep.subr.bf16.mxu0 0
        %2546 = vmatpush1.bf16.msra.mxu0 %v2479
        %2547 = vmatprep.subr.bf16.mxu0 0
        %2548 = vmatpush1.bf16.msra.mxu0 %v2478
        %2549 = vmatprep.subr.bf16.mxu0 0
        %2550 = vmatpush1.bf16.msra.mxu0 %v2477
        %2551 = vmatprep.subr.bf16.mxu0 0
        %2552 = vmatpush1.bf16.msra.mxu0 %v2476
        %2553 = vmatprep.subr.bf16.mxu0 0
        %2554 = vmatpush1.bf16.msra.mxu0 %v2475
        %2555 = vmatprep.subr.bf16.mxu0 0
        %2556 = vmatpush1.bf16.msra.mxu0 %v2474
        %2557 = vmatprep.subr.bf16.mxu0 0
        %2558 = vmatpush1.bf16.msra.mxu0 %v2473
        %2559 = vmatprep.subr.bf16.mxu0 0
        %2560 = vmatpush1.bf16.msra.mxu0 %v2472
        %2561 = vmatprep.subr.bf16.mxu0 0
        %2562 = vmatpush2.bf16.msra.mxu0 0
        %2563 = vmatprep.subr.bf16.mxu0 0
        %2564 = vmatpush2.bf16.msra.mxu0 0
        %2565 = vmatprep.subr.bf16.mxu0 0
        %2566 = vmatpush2.bf16.msra.mxu0 0
        %2567 = vmatprep.subr.bf16.mxu0 0
        %2568 = vmatpush2.bf16.msra.mxu0 0
        %2569 = vmatprep.subr.bf16.mxu0 0
        %2570 = vmatpush2.bf16.msra.mxu0 0
        %2571 = vmatprep.subr.bf16.mxu0 0
        %2572 = vmatpush2.bf16.msra.mxu0 0
        %2573 = vmatprep.subr.bf16.mxu0 0
        %2574 = vmatpush2.bf16.msra.mxu0 0
        %2575 = vmatprep.subr.bf16.mxu0 0
        %2576 = vmatpush2.bf16.msra.mxu0 0
        %2577 = vmatprep.mubr.bf16.mxu0 0
        %2578 = vmatmul.mubr.bf16.gmra.mxu0 %v2304
        %v2579 = vpop.f32.mrf.mxu0
        %v2580 = vadd.f32 %v2539, %v2579
        %v2581 = vpop.f32.mrf.mxu0
        %v2582 = vpop.f32.mrf.mxu0
        %v2583 = vadd.f32 %v2542, %v2582
        %v2584 = vpop.f32.mrf.mxu0
        %2585 = vdwg.mxu0
        %vm2586 = vcmp.ge.f32.partialorder %v2580, 0.0
        %vm2587 = vcmp.ge.f32.partialorder %v2583, 0.0
        %v2588 = vmul.f32 %v2580, 0.01
        %v2589 = vmul.f32 %v2583, 0.01
        %v2590 = vsel %vm2586, %v2580, %v2588
        %v2591 = vsel %vm2587, %v2583, %v2589
        %v2592 = vpack.c.bf16 %v1995, %v1994
        %v2593 = vld [vmem:[#allocation17] sm:$0xf]
        %v2594 = vld [vmem:[#allocation17 + $0x4] sm:$0xf]
        %v2595 = vld [vmem:[#allocation17 + $0x8] sm:$0xf]
        %v2596 = vld [vmem:[#allocation17 + $0xc] sm:$0xf]
        %v2597 = vld [vmem:[#allocation17 + $0x10] sm:$0xf]
        %v2598 = vld [vmem:[#allocation17 + $0x14] sm:$0xf]
        %v2599 = vld [vmem:[#allocation17 + $0x18] sm:$0xf]
        %v2600 = vld [vmem:[#allocation17 + $0x1c] sm:$0xf]
        %v2601 = vld [vmem:[#allocation17 + $0x20] sm:$0xf]
        %v2602 = vld [vmem:[#allocation17 + $0x24] sm:$0xf]
        %v2603 = vld [vmem:[#allocation17 + $0x28] sm:$0xf]
        %v2604 = vld [vmem:[#allocation17 + $0x2c] sm:$0xf]
        %v2605 = vld [vmem:[#allocation17 + $0x30] sm:$0xf]
        %v2606 = vld [vmem:[#allocation17 + $0x34] sm:$0xf]
        %v2607 = vld [vmem:[#allocation17 + $0x38] sm:$0xf]
        %v2608 = vld [vmem:[#allocation17 + $0x3c] sm:$0xf]
        %v2609 = vld [vmem:[%s16] sm:$0x1]
        %v2611 = vlaneseq
        %v2612 = vshrl.u32 %v2611, 7
        %v2613 = vsub.s32 0, %v2612
        %v2614 = vrot.slane %v2609, %v2613
        %v2632 = vunpack.c.l.b16 %v2593
        %v2633 = vunpack.c.l.b16 %v2594
        %v2634 = vunpack.c.l.b16 %v2595
        %v2635 = vunpack.c.l.b16 %v2596
        %v2636 = vunpack.c.l.b16 %v2597
        %v2637 = vunpack.c.l.b16 %v2598
        %v2638 = vunpack.c.l.b16 %v2599
        %v2639 = vunpack.c.l.b16 %v2600
        %v2640 = vunpack.c.l.b16 %v2601
        %v2641 = vunpack.c.l.b16 %v2602
        %v2642 = vunpack.c.l.b16 %v2603
        %v2643 = vunpack.c.l.b16 %v2604
        %v2644 = vunpack.c.l.b16 %v2605
        %v2645 = vunpack.c.l.b16 %v2606
        %v2646 = vunpack.c.l.b16 %v2607
        %v2647 = vunpack.c.l.b16 %v2608
        %v2648 = vpack.c.b16 %v2633, %v2632
        %v2649 = vpack.c.b16 %v2635, %v2634
        %v2650 = vpack.c.b16 %v2637, %v2636
        %v2651 = vpack.c.b16 %v2639, %v2638
        %v2652 = vpack.c.b16 %v2641, %v2640
        %v2653 = vpack.c.b16 %v2643, %v2642
        %v2654 = vpack.c.b16 %v2645, %v2644
        %v2655 = vpack.c.b16 %v2647, %v2646
        %2664 = vmatprep.subr.bf16.mxu0 0
        %2665 = vmatpush1.bf16.msra.mxu0 %v2655
        %2666 = vmatprep.subr.bf16.mxu0 0
        %2667 = vmatpush1.bf16.msra.mxu0 %v2654
        %2668 = vmatprep.subr.bf16.mxu0 0
        %2669 = vmatpush1.bf16.msra.mxu0 %v2653
        %2670 = vmatprep.subr.bf16.mxu0 0
        %2671 = vmatpush1.bf16.msra.mxu0 %v2652
        %2672 = vmatprep.subr.bf16.mxu0 0
        %2673 = vmatpush1.bf16.msra.mxu0 %v2651
        %2674 = vmatprep.subr.bf16.mxu0 0
        %2675 = vmatpush1.bf16.msra.mxu0 %v2650
        %2676 = vmatprep.subr.bf16.mxu0 0
        %2677 = vmatpush1.bf16.msra.mxu0 %v2649
        %2678 = vmatprep.subr.bf16.mxu0 0
        %2679 = vmatpush1.bf16.msra.mxu0 %v2648
        %2680 = vmatprep.subr.bf16.mxu0 0
        %2681 = vmatpush2.bf16.msra.mxu0 0
        %2682 = vmatprep.subr.bf16.mxu0 0
        %2683 = vmatpush2.bf16.msra.mxu0 0
        %2684 = vmatprep.subr.bf16.mxu0 0
        %2685 = vmatpush2.bf16.msra.mxu0 0
        %2686 = vmatprep.subr.bf16.mxu0 0
        %2687 = vmatpush2.bf16.msra.mxu0 0
        %2688 = vmatprep.subr.bf16.mxu0 0
        %2689 = vmatpush2.bf16.msra.mxu0 0
        %2690 = vmatprep.subr.bf16.mxu0 0
        %2691 = vmatpush2.bf16.msra.mxu0 0
        %2692 = vmatprep.subr.bf16.mxu0 0
        %2693 = vmatpush2.bf16.msra.mxu0 0
        %2694 = vmatprep.subr.bf16.mxu0 0
        %2695 = vmatpush2.bf16.msra.mxu0 0
        %2696 = vmatprep.mubr.bf16.mxu0 0
        %2697 = vmatmul.mubr.bf16.gmra.mxu0 %v2592
        %v2698 = vpop.f32.mrf.mxu0
        %v2699 = vadd.f32 %v2614, %v2698
        %v2700 = vpop.f32.mrf.mxu0
        %v2701 = vpop.f32.mrf.mxu0
        %v2702 = vadd.f32 %v2614, %v2701
        %v2703 = vpop.f32.mrf.mxu0
        %2704 = vdwg.mxu0
        %v2705 = vadd.f32 %v2590, %v2699
        %v2706 = vadd.f32 %v2591, %v2702
        %2707 = vst [vmem:[%s682] sm:$0xff] %v2705
        %2708 = vst [vmem:[%s682 + $0x8] sm:$0xff] %v2706
        %s2709 = sand.u32 %s408, 1
        %s2710 = scalar_lea.sflag [#allocation5], %s2709
        %s2711 = sand.u32 %s408, 1
        %s2712 = smul.addr %s2711, 16
        %s2713 = scalar_lea.vmem [#allocation18], %s2712
        // Predicated region
        $region125: #{tpu_custom_call.1} parent=87 // pred_check
          %p2714 = pneg %p418
        $region126: #{tpu_custom_call.1} parent=87 // pred_check_branch
          %2716 = sbr.rel (%p2714) target = $region128
        $region127: #{tpu_custom_call.1} parent=87 // pred_region
          %s2718 = ssub.s32 256, 256
          %2719 = vsyncadd %s2710, %s2718
          %s2720 = smul.addr %s38, 2
          %s2721 = smul.addr %s2720, 128
          %s2722 = scalar_lea.hbm %s17, %s2721
          %s2723 = sshll.u32 %s2713, 4
          %s2724 = int_to_ptr.vmem [resolvable:$true] %s2723
          %2729 = dma.vmem_to_hbm [thread:$0]  %s2724, 256, %s2722, %s2710, 128, 128, 8
        $region128: #{tpu_custom_call.1} parent=87 // pred_fallthru
          _
      $region88: #{tpu_custom_call.1} parent=5 // pred_fallthru
        _
      %p2730 = scmp.le.s32.totalorder 2, %s33
      // Predicated region
      $region129: #{tpu_custom_call.1} parent=5 // pred_check
        %p2731 = pneg %p2730
      $region130: #{tpu_custom_call.1} parent=5 // pred_check_branch
        %2733 = sbr.rel (%p2731) target = $region132
      $region131: #{tpu_custom_call.1} parent=5 // pred_region
        %s2734 = ssub.s32 %s33, 2
        // Predicated region
        $region133: #{tpu_custom_call.1} parent=131 // pred_check
          %p2735 = pneg %p424
        $region134: #{tpu_custom_call.1} parent=131 // pred_check_branch
          %2737 = sbr.rel (%p2735) target = $region136
        $region135: #{tpu_custom_call.1} parent=131 // pred_region
          %s2738 = sand.u32 %s409, 1
          %s2739 = scalar_lea.sflag [#allocation5], %s2738
          %s2740 = sand.u32 %s409, 1
          %s2741 = smul.addr %s2740, 16
          %s2742 = scalar_lea.vmem [#allocation18], %s2741
          %2743 = dma.done %s2739, 256
        $region136: #{tpu_custom_call.1} parent=131 // pred_fallthru
          _
      $region132: #{tpu_custom_call.1} parent=5 // pred_fallthru
        _
    $region6: #{tpu_custom_call.1} parent=1 // loop_footer
      %s37 = sadd.s32 1, %s33
    $region7: #{tpu_custom_call.1} parent=1 // loop_footer_branch
      %32 = sbr.rel target = $region3
    $region8: #{tpu_custom_call.1} parent=1 // loop_exit
      _
    %2744 = vsyncpa [#allocation4], 1
    %s2745 = scalar_lea.sflag [#allocation4], 1
    %2746 = vsyncpa %s2745, 1
    %2747 = vsyncpa [#allocation7], 1
    %2748 = vsyncpa [#allocation10], 1
    %2749 = vsyncpa [#allocation13], 1
    %2750 = vsyncpa [#allocation16], 1
    %2751 = vsyncpa [#allocation5], 1
    %s2752 = scalar_lea.sflag [#allocation5], 1
    %2753 = vsyncpa %s2752, 1

</llo_original>
